<compile_context>
chip_gen: v6e
topology: v6e:2x2x1
jax: 0.10.0
libtpu: 0.0.40
codegen_flags: <defaults>
</compile_context>

<pallas_src>
import jax
import jax.numpy as jnp
from jax.experimental import pallas as pl
from jax.experimental.pallas import tpu as pltpu

B, C, S, F = 8, 8, 128, 4   # batch, breakpoint classes, sequence length, features
TASK_NUM = 2


def _fused_kernel(x_ref, label_ref, bp_ref,
                  w_reg_ref, b_reg_ref, w_bp_ref, b_bp_ref, lv_ref,
                  loss_ref, pred_ref, logits_ref):
    # ---------- fused per-position linear model (F=4 contraction on the VPU) ----------
    xs = [x_ref[f] for f in range(F)]                     # F contiguous (B, S) tiles

    pred = xs[0] * w_reg_ref[0]
    for f in range(1, F):
        pred = pred + xs[f] * w_reg_ref[f]
    pred = pred + b_reg_ref[0]                            # (B, S)
    pred_ref[...] = pred

    # per-class logits kept as C separate (B, S) values for the loss math
    logits = []
    for c in range(C):
        l = xs[0] * w_bp_ref[c, 0]
        for f in range(1, F):
            l = l + xs[f] * w_bp_ref[c, f]
        logits.append(l + b_bp_ref[c])

    # Assemble the NCW (B, C, S) breakpoint-logits OUTPUT (required because the
    # wrapper must return the model output, like the PyTorch forward). This is
    # the only (B,C,S) materialization; it is not re-read by the loss math.
    c_iota = jax.lax.broadcasted_iota(jnp.int32, (B, C, S), 1)
    out_bcs = jnp.zeros((B, C, S), jnp.float32)
    for c in range(C):
        out_bcs = jnp.where(c_iota == c, logits[c][:, None, :], out_bcs)
    logits_ref[...] = out_bcs

    # ---------- huber (smooth L1) loss, reduction='none' then mean over last dim ----------
    label = label_ref[...]                                # (B, S)
    diff = pred - label
    ad = jnp.abs(diff)
    huber_elem = jnp.where(ad < 1.0, 0.5 * diff * diff, ad - 0.5)
    huber = jnp.mean(huber_elem, axis=-1, keepdims=True)  # (B, 1)

    # ---------- cross entropy with logits + inverse-frequency class weights ----------
    # log-softmax over the class axis, streamed over the unrolled per-class list
    m = logits[0]
    for c in range(1, C):
        m = jnp.maximum(m, logits[c])
    se = jnp.exp(logits[0] - m)
    for c in range(1, C):
        se = se + jnp.exp(logits[c] - m)
    lse = m + jnp.log(se)                                 # (B, S)

    bp = bp_ref[...]                                      # (B, S) int32
    picked = jnp.zeros_like(lse)
    counts = []
    for c in range(C):
        maskf = (bp == c).astype(jnp.float32)
        picked = picked + maskf * logits[c]
        counts.append(jnp.sum(maskf))                     # scalar count per class
    nll = lse - picked                                    # (B, S)

    # class weights: w_c ∝ 1/count_c, normalized to sum 1 (cross_entropy_weight);
    # torch.unique singleton case -> weight=None (unweighted CE). Pure scalar math.
    inv = [jnp.where(cnt > 0.0, 1.0 / jnp.maximum(cnt, 1.0), 0.0) for cnt in counts]
    total_inv = inv[0]
    num_present = (counts[0] > 0.0).astype(jnp.float32)
    for c in range(1, C):
        total_inv = total_inv + inv[c]
        num_present = num_present + (counts[c] > 0.0).astype(jnp.float32)
    unweighted = num_present <= 1.0
    ws = [jnp.where(unweighted, 1.0, iv / total_inv) for iv in inv]

    # per-element weight w[bp[b,s]] via the same unrolled mask loop
    elem_w = jnp.zeros_like(nll)
    for c in range(C):
        maskf = (bp == c).astype(jnp.float32)
        elem_w = elem_w + maskf * ws[c]
    bp_loss = jnp.mean(elem_w * nll, axis=-1, keepdims=True)   # (B, 1)

    # ---------- uncertainty-weighted multi-task combination ----------
    lv0 = lv_ref[0]
    lv1 = lv_ref[1]
    precision1 = jnp.exp(-lv0)
    precision2 = jnp.exp(-lv1)
    loss_per = (0.5 * precision1 * huber + 0.5 * lv0
                + precision2 * bp_loss + 0.5 * lv1)            # (B, 1)
    loss_ref[0, 0] = jnp.mean(loss_per)


def multi_task_forward(batch, params, log_vars):
    """Mimics MultiTaskLossWrapper.forward: returns (loss, output, log_vars list)."""
    vmem = pltpu.MemorySpace.VMEM
    smem = pltpu.MemorySpace.SMEM
    loss, pred, logits = pl.pallas_call(
        _fused_kernel,
        out_shape=(
            jax.ShapeDtypeStruct((1, 1), jnp.float32),       # scalar loss
            jax.ShapeDtypeStruct((B, S), jnp.float32),       # model regression output
            jax.ShapeDtypeStruct((B, C, S), jnp.float32),    # model breakpoint logits (NCW)
        ),
        in_specs=[
            pl.BlockSpec(memory_space=vmem),   # input        (F, B, S) f32
            pl.BlockSpec(memory_space=vmem),   # label        (B, S)    f32
            pl.BlockSpec(memory_space=vmem),   # breakpoints  (B, S)    int32
            pl.BlockSpec(memory_space=smem),   # w_reg        (F,)
            pl.BlockSpec(memory_space=smem),   # b_reg        (1,)
            pl.BlockSpec(memory_space=smem),   # w_bp         (C, F)
            pl.BlockSpec(memory_space=smem),   # b_bp         (C,)
            pl.BlockSpec(memory_space=smem),   # log_vars     (2,)
        ],
        out_specs=(
            pl.BlockSpec(memory_space=smem),
            pl.BlockSpec(memory_space=vmem),
            pl.BlockSpec(memory_space=vmem),
        ),
    )(batch["input"], batch["label"], batch["breakpoints"],
      params["w_reg"], params["b_reg"], params["w_bp"], params["b_bp"],
      log_vars)
    output = {"output": pred, "breakpoints": logits}
    return loss[0, 0], output, [float(v) for v in log_vars]


# ------------------------------ reference (plain jnp) ------------------------------
def reference_forward(batch, params, log_vars):
    x = batch["input"]                                    # (F, B, S)
    pred = jnp.einsum("f,fbs->bs", params["w_reg"], x) + params["b_reg"][0]
    logits = jnp.einsum("cf,fbs->bcs", params["w_bp"], x) + params["b_bp"][None, :, None]

    label = batch["label"]
    diff = pred - label
    ad = jnp.abs(diff)
    huber = jnp.mean(jnp.where(ad < 1.0, 0.5 * diff * diff, ad - 0.5), axis=-1)

    bp = batch["breakpoints"]
    logp = jax.nn.log_softmax(logits, axis=1)
    onehot = jax.nn.one_hot(bp, C, axis=1, dtype=jnp.float32)
    nll = -jnp.sum(logp * onehot, axis=1)
    counts = jnp.sum(onehot, axis=(0, 2))
    inv = jnp.where(counts > 0, 1.0 / jnp.maximum(counts, 1.0), 0.0)
    w = inv / jnp.sum(inv)
    w = jnp.where(jnp.sum(counts > 0) <= 1, jnp.ones_like(w), w)
    elem_w = jnp.sum(onehot * w[None, :, None], axis=1)
    bp_loss = jnp.mean(elem_w * nll, axis=-1)

    loss = (0.5 * jnp.exp(-log_vars[0]) * huber + 0.5 * log_vars[0]
            + jnp.exp(-log_vars[1]) * bp_loss + 0.5 * log_vars[1])
    return jnp.mean(loss), pred, logits


if __name__ == "__main__":
    key = jax.random.PRNGKey(0)
    k1, k2, k3, k4, k5, k6 = jax.random.split(key, 6)

    batch = {
        # feature-major layout so each feature plane is a contiguous (B,S) tile
        "input": jax.random.normal(k1, (F, B, S), dtype=jnp.float32),
        "label": jax.random.normal(k2, (B, S), dtype=jnp.float32),
        "breakpoints": jax.random.randint(k3, (B, S), 0, C, dtype=jnp.int32),
    }
    params = {
        "w_reg": jax.random.normal(k4, (F,), dtype=jnp.float32) * 0.1,
        "b_reg": jnp.zeros((1,), dtype=jnp.float32),
        "w_bp": jax.random.normal(k5, (C, F), dtype=jnp.float32) * 0.1,
        "b_bp": jax.random.normal(k6, (C,), dtype=jnp.float32) * 0.1,
    }
    # nn.Parameter(torch.zeros(task_num))
    log_vars = jnp.zeros((TASK_NUM,), dtype=jnp.float32)

    loss, output, log_vars_list = multi_task_forward(batch, params, log_vars)
    loss = jax.block_until_ready(loss)

    ref_loss, ref_pred, ref_logits = reference_forward(batch, params, log_vars)
    assert jnp.isfinite(loss), "loss is not finite"
    assert jnp.allclose(loss, ref_loss, rtol=1e-4, atol=1e-5), (loss, ref_loss)
    assert jnp.allclose(output["output"], ref_pred, rtol=1e-4, atol=1e-5)
    assert jnp.allclose(output["breakpoints"], ref_logits, rtol=1e-4, atol=1e-5)
    print("KERNEL_OK")
</pallas_src>

<mosaic_0001>
module attributes {stable_mosaic.version = 11 : i64} {
  func.func @_fused_kernel(%arg0: memref<4x8x128xf32, #tpu.memory_space<vmem>>, %arg1: memref<8x128xf32, #tpu.memory_space<vmem>>, %arg2: memref<8x128xi32, #tpu.memory_space<vmem>>, %arg3: memref<4xf32, #tpu.memory_space<smem>>, %arg4: memref<1xf32, #tpu.memory_space<smem>>, %arg5: memref<8x4xf32, #tpu.memory_space<smem>>, %arg6: memref<8xf32, #tpu.memory_space<smem>>, %arg7: memref<2xf32, #tpu.memory_space<smem>>, %arg8: memref<1x1xf32, #tpu.memory_space<smem>>, %arg9: memref<8x128xf32, #tpu.memory_space<vmem>>, %arg10: memref<8x8x128xf32, #tpu.memory_space<vmem>>) attributes {dimension_semantics = [], scalar_prefetch = 0 : i64, scratch_operands = 0 : i64, tpu.core_type = #tpu.core_type<tc>} {
    %c0 = arith.constant 0 : index
    %c0_0 = arith.constant 0 : index
    %c0_1 = arith.constant 0 : index
    %0 = vector.load %arg0[%c0, %c0_0, %c0_1] : memref<4x8x128xf32, #tpu.memory_space<vmem>>, vector<1x8x128xf32>
    %1 = vector.shape_cast %0 : vector<1x8x128xf32> to vector<8x128xf32>
    %c1 = arith.constant 1 : index
    %c0_2 = arith.constant 0 : index
    %c0_3 = arith.constant 0 : index
    %2 = vector.load %arg0[%c1, %c0_2, %c0_3] : memref<4x8x128xf32, #tpu.memory_space<vmem>>, vector<1x8x128xf32>
    %3 = vector.shape_cast %2 : vector<1x8x128xf32> to vector<8x128xf32>
    %c2 = arith.constant 2 : index
    %c0_4 = arith.constant 0 : index
    %c0_5 = arith.constant 0 : index
    %4 = vector.load %arg0[%c2, %c0_4, %c0_5] : memref<4x8x128xf32, #tpu.memory_space<vmem>>, vector<1x8x128xf32>
    %5 = vector.shape_cast %4 : vector<1x8x128xf32> to vector<8x128xf32>
    %c3 = arith.constant 3 : index
    %c0_6 = arith.constant 0 : index
    %c0_7 = arith.constant 0 : index
    %6 = vector.load %arg0[%c3, %c0_6, %c0_7] : memref<4x8x128xf32, #tpu.memory_space<vmem>>, vector<1x8x128xf32>
    %7 = vector.shape_cast %6 : vector<1x8x128xf32> to vector<8x128xf32>
    %c0_8 = arith.constant 0 : index
    %8 = memref.load %arg3[%c0_8] : memref<4xf32, #tpu.memory_space<smem>>
    %9 = vector.broadcast %8 : f32 to vector<8x128xf32>
    %10 = arith.mulf %1, %9 : vector<8x128xf32>
    %c1_9 = arith.constant 1 : index
    %11 = memref.load %arg3[%c1_9] : memref<4xf32, #tpu.memory_space<smem>>
    %12 = vector.broadcast %11 : f32 to vector<8x128xf32>
    %13 = arith.mulf %3, %12 : vector<8x128xf32>
    %14 = arith.addf %10, %13 : vector<8x128xf32>
    %c2_10 = arith.constant 2 : index
    %15 = memref.load %arg3[%c2_10] : memref<4xf32, #tpu.memory_space<smem>>
    %16 = vector.broadcast %15 : f32 to vector<8x128xf32>
    %17 = arith.mulf %5, %16 : vector<8x128xf32>
    %18 = arith.addf %14, %17 : vector<8x128xf32>
    %c3_11 = arith.constant 3 : index
    %19 = memref.load %arg3[%c3_11] : memref<4xf32, #tpu.memory_space<smem>>
    %20 = vector.broadcast %19 : f32 to vector<8x128xf32>
    %21 = arith.mulf %7, %20 : vector<8x128xf32>
    %22 = arith.addf %18, %21 : vector<8x128xf32>
    %c0_12 = arith.constant 0 : index
    %23 = memref.load %arg4[%c0_12] : memref<1xf32, #tpu.memory_space<smem>>
    %24 = vector.broadcast %23 : f32 to vector<8x128xf32>
    %25 = arith.addf %22, %24 : vector<8x128xf32>
    %c0_13 = arith.constant 0 : index
    %c0_14 = arith.constant 0 : index
    %26 = vector.load %arg9[%c0_13, %c0_14] : memref<8x128xf32, #tpu.memory_space<vmem>>, vector<8x128xf32>
    tpu.vector_store %arg9[%c0_13, %c0_14], %25 {strides = array<i32>} : memref<8x128xf32, #tpu.memory_space<vmem>>, vector<8x128xf32>,
    %c0_15 = arith.constant 0 : index
    %c0_16 = arith.constant 0 : index
    %27 = memref.load %arg5[%c0_15, %c0_16] : memref<8x4xf32, #tpu.memory_space<smem>>
    %28 = vector.broadcast %27 : f32 to vector<8x128xf32>
    %29 = arith.mulf %1, %28 : vector<8x128xf32>
    %c0_17 = arith.constant 0 : index
    %c1_18 = arith.constant 1 : index
    %30 = memref.load %arg5[%c0_17, %c1_18] : memref<8x4xf32, #tpu.memory_space<smem>>
    %31 = vector.broadcast %30 : f32 to vector<8x128xf32>
    %32 = arith.mulf %3, %31 : vector<8x128xf32>
    %33 = arith.addf %29, %32 : vector<8x128xf32>
    %c0_19 = arith.constant 0 : index
    %c2_20 = arith.constant 2 : index
    %34 = memref.load %arg5[%c0_19, %c2_20] : memref<8x4xf32, #tpu.memory_space<smem>>
    %35 = vector.broadcast %34 : f32 to vector<8x128xf32>
    %36 = arith.mulf %5, %35 : vector<8x128xf32>
    %37 = arith.addf %33, %36 : vector<8x128xf32>
    %c0_21 = arith.constant 0 : index
    %c3_22 = arith.constant 3 : index
    %38 = memref.load %arg5[%c0_21, %c3_22] : memref<8x4xf32, #tpu.memory_space<smem>>
    %39 = vector.broadcast %38 : f32 to vector<8x128xf32>
    %40 = arith.mulf %7, %39 : vector<8x128xf32>
    %41 = arith.addf %37, %40 : vector<8x128xf32>
    %c0_23 = arith.constant 0 : index
    %42 = memref.load %arg6[%c0_23] : memref<8xf32, #tpu.memory_space<smem>>
    %43 = vector.broadcast %42 : f32 to vector<8x128xf32>
    %44 = arith.addf %41, %43 : vector<8x128xf32>
    %c1_24 = arith.constant 1 : index
    %c0_25 = arith.constant 0 : index
    %45 = memref.load %arg5[%c1_24, %c0_25] : memref<8x4xf32, #tpu.memory_space<smem>>
    %46 = vector.broadcast %45 : f32 to vector<8x128xf32>
    %47 = arith.mulf %1, %46 : vector<8x128xf32>
    %c1_26 = arith.constant 1 : index
    %c1_27 = arith.constant 1 : index
    %48 = memref.load %arg5[%c1_26, %c1_27] : memref<8x4xf32, #tpu.memory_space<smem>>
    %49 = vector.broadcast %48 : f32 to vector<8x128xf32>
    %50 = arith.mulf %3, %49 : vector<8x128xf32>
    %51 = arith.addf %47, %50 : vector<8x128xf32>
    %c1_28 = arith.constant 1 : index
    %c2_29 = arith.constant 2 : index
    %52 = memref.load %arg5[%c1_28, %c2_29] : memref<8x4xf32, #tpu.memory_space<smem>>
    %53 = vector.broadcast %52 : f32 to vector<8x128xf32>
    %54 = arith.mulf %5, %53 : vector<8x128xf32>
    %55 = arith.addf %51, %54 : vector<8x128xf32>
    %c1_30 = arith.constant 1 : index
    %c3_31 = arith.constant 3 : index
    %56 = memref.load %arg5[%c1_30, %c3_31] : memref<8x4xf32, #tpu.memory_space<smem>>
    %57 = vector.broadcast %56 : f32 to vector<8x128xf32>
    %58 = arith.mulf %7, %57 : vector<8x128xf32>
    %59 = arith.addf %55, %58 : vector<8x128xf32>
    %c1_32 = arith.constant 1 : index
    %60 = memref.load %arg6[%c1_32] : memref<8xf32, #tpu.memory_space<smem>>
    %61 = vector.broadcast %60 : f32 to vector<8x128xf32>
    %62 = arith.addf %59, %61 : vector<8x128xf32>
    %c2_33 = arith.constant 2 : index
    %c0_34 = arith.constant 0 : index
    %63 = memref.load %arg5[%c2_33, %c0_34] : memref<8x4xf32, #tpu.memory_space<smem>>
    %64 = vector.broadcast %63 : f32 to vector<8x128xf32>
    %65 = arith.mulf %1, %64 : vector<8x128xf32>
    %c2_35 = arith.constant 2 : index
    %c1_36 = arith.constant 1 : index
    %66 = memref.load %arg5[%c2_35, %c1_36] : memref<8x4xf32, #tpu.memory_space<smem>>
    %67 = vector.broadcast %66 : f32 to vector<8x128xf32>
    %68 = arith.mulf %3, %67 : vector<8x128xf32>
    %69 = arith.addf %65, %68 : vector<8x128xf32>
    %c2_37 = arith.constant 2 : index
    %c2_38 = arith.constant 2 : index
    %70 = memref.load %arg5[%c2_37, %c2_38] : memref<8x4xf32, #tpu.memory_space<smem>>
    %71 = vector.broadcast %70 : f32 to vector<8x128xf32>
    %72 = arith.mulf %5, %71 : vector<8x128xf32>
    %73 = arith.addf %69, %72 : vector<8x128xf32>
    %c2_39 = arith.constant 2 : index
    %c3_40 = arith.constant 3 : index
    %74 = memref.load %arg5[%c2_39, %c3_40] : memref<8x4xf32, #tpu.memory_space<smem>>
    %75 = vector.broadcast %74 : f32 to vector<8x128xf32>
    %76 = arith.mulf %7, %75 : vector<8x128xf32>
    %77 = arith.addf %73, %76 : vector<8x128xf32>
    %c2_41 = arith.constant 2 : index
    %78 = memref.load %arg6[%c2_41] : memref<8xf32, #tpu.memory_space<smem>>
    %79 = vector.broadcast %78 : f32 to vector<8x128xf32>
    %80 = arith.addf %77, %79 : vector<8x128xf32>
    %c3_42 = arith.constant 3 : index
    %c0_43 = arith.constant 0 : index
    %81 = memref.load %arg5[%c3_42, %c0_43] : memref<8x4xf32, #tpu.memory_space<smem>>
    %82 = vector.broadcast %81 : f32 to vector<8x128xf32>
    %83 = arith.mulf %1, %82 : vector<8x128xf32>
    %c3_44 = arith.constant 3 : index
    %c1_45 = arith.constant 1 : index
    %84 = memref.load %arg5[%c3_44, %c1_45] : memref<8x4xf32, #tpu.memory_space<smem>>
    %85 = vector.broadcast %84 : f32 to vector<8x128xf32>
    %86 = arith.mulf %3, %85 : vector<8x128xf32>
    %87 = arith.addf %83, %86 : vector<8x128xf32>
    %c3_46 = arith.constant 3 : index
    %c2_47 = arith.constant 2 : index
    %88 = memref.load %arg5[%c3_46, %c2_47] : memref<8x4xf32, #tpu.memory_space<smem>>
    %89 = vector.broadcast %88 : f32 to vector<8x128xf32>
    %90 = arith.mulf %5, %89 : vector<8x128xf32>
    %91 = arith.addf %87, %90 : vector<8x128xf32>
    %c3_48 = arith.constant 3 : index
    %c3_49 = arith.constant 3 : index
    %92 = memref.load %arg5[%c3_48, %c3_49] : memref<8x4xf32, #tpu.memory_space<smem>>
    %93 = vector.broadcast %92 : f32 to vector<8x128xf32>
    %94 = arith.mulf %7, %93 : vector<8x128xf32>
    %95 = arith.addf %91, %94 : vector<8x128xf32>
    %c3_50 = arith.constant 3 : index
    %96 = memref.load %arg6[%c3_50] : memref<8xf32, #tpu.memory_space<smem>>
    %97 = vector.broadcast %96 : f32 to vector<8x128xf32>
    %98 = arith.addf %95, %97 : vector<8x128xf32>
    %c4 = arith.constant 4 : index
    %c0_51 = arith.constant 0 : index
    %99 = memref.load %arg5[%c4, %c0_51] : memref<8x4xf32, #tpu.memory_space<smem>>
    %100 = vector.broadcast %99 : f32 to vector<8x128xf32>
    %101 = arith.mulf %1, %100 : vector<8x128xf32>
    %c4_52 = arith.constant 4 : index
    %c1_53 = arith.constant 1 : index
    %102 = memref.load %arg5[%c4_52, %c1_53] : memref<8x4xf32, #tpu.memory_space<smem>>
    %103 = vector.broadcast %102 : f32 to vector<8x128xf32>
    %104 = arith.mulf %3, %103 : vector<8x128xf32>
    %105 = arith.addf %101, %104 : vector<8x128xf32>
    %c4_54 = arith.constant 4 : index
    %c2_55 = arith.constant 2 : index
    %106 = memref.load %arg5[%c4_54, %c2_55] : memref<8x4xf32, #tpu.memory_space<smem>>
    %107 = vector.broadcast %106 : f32 to vector<8x128xf32>
    %108 = arith.mulf %5, %107 : vector<8x128xf32>
    %109 = arith.addf %105, %108 : vector<8x128xf32>
    %c4_56 = arith.constant 4 : index
    %c3_57 = arith.constant 3 : index
    %110 = memref.load %arg5[%c4_56, %c3_57] : memref<8x4xf32, #tpu.memory_space<smem>>
    %111 = vector.broadcast %110 : f32 to vector<8x128xf32>
    %112 = arith.mulf %7, %111 : vector<8x128xf32>
    %113 = arith.addf %109, %112 : vector<8x128xf32>
    %c4_58 = arith.constant 4 : index
    %114 = memref.load %arg6[%c4_58] : memref<8xf32, #tpu.memory_space<smem>>
    %115 = vector.broadcast %114 : f32 to vector<8x128xf32>
    %116 = arith.addf %113, %115 : vector<8x128xf32>
    %c5 = arith.constant 5 : index
    %c0_59 = arith.constant 0 : index
    %117 = memref.load %arg5[%c5, %c0_59] : memref<8x4xf32, #tpu.memory_space<smem>>
    %118 = vector.broadcast %117 : f32 to vector<8x128xf32>
    %119 = arith.mulf %1, %118 : vector<8x128xf32>
    %c5_60 = arith.constant 5 : index
    %c1_61 = arith.constant 1 : index
    %120 = memref.load %arg5[%c5_60, %c1_61] : memref<8x4xf32, #tpu.memory_space<smem>>
    %121 = vector.broadcast %120 : f32 to vector<8x128xf32>
    %122 = arith.mulf %3, %121 : vector<8x128xf32>
    %123 = arith.addf %119, %122 : vector<8x128xf32>
    %c5_62 = arith.constant 5 : index
    %c2_63 = arith.constant 2 : index
    %124 = memref.load %arg5[%c5_62, %c2_63] : memref<8x4xf32, #tpu.memory_space<smem>>
    %125 = vector.broadcast %124 : f32 to vector<8x128xf32>
    %126 = arith.mulf %5, %125 : vector<8x128xf32>
    %127 = arith.addf %123, %126 : vector<8x128xf32>
    %c5_64 = arith.constant 5 : index
    %c3_65 = arith.constant 3 : index
    %128 = memref.load %arg5[%c5_64, %c3_65] : memref<8x4xf32, #tpu.memory_space<smem>>
    %129 = vector.broadcast %128 : f32 to vector<8x128xf32>
    %130 = arith.mulf %7, %129 : vector<8x128xf32>
    %131 = arith.addf %127, %130 : vector<8x128xf32>
    %c5_66 = arith.constant 5 : index
    %132 = memref.load %arg6[%c5_66] : memref<8xf32, #tpu.memory_space<smem>>
    %133 = vector.broadcast %132 : f32 to vector<8x128xf32>
    %134 = arith.addf %131, %133 : vector<8x128xf32>
    %c6 = arith.constant 6 : index
    %c0_67 = arith.constant 0 : index
    %135 = memref.load %arg5[%c6, %c0_67] : memref<8x4xf32, #tpu.memory_space<smem>>
    %136 = vector.broadcast %135 : f32 to vector<8x128xf32>
    %137 = arith.mulf %1, %136 : vector<8x128xf32>
    %c6_68 = arith.constant 6 : index
    %c1_69 = arith.constant 1 : index
    %138 = memref.load %arg5[%c6_68, %c1_69] : memref<8x4xf32, #tpu.memory_space<smem>>
    %139 = vector.broadcast %138 : f32 to vector<8x128xf32>
    %140 = arith.mulf %3, %139 : vector<8x128xf32>
    %141 = arith.addf %137, %140 : vector<8x128xf32>
    %c6_70 = arith.constant 6 : index
    %c2_71 = arith.constant 2 : index
    %142 = memref.load %arg5[%c6_70, %c2_71] : memref<8x4xf32, #tpu.memory_space<smem>>
    %143 = vector.broadcast %142 : f32 to vector<8x128xf32>
    %144 = arith.mulf %5, %143 : vector<8x128xf32>
    %145 = arith.addf %141, %144 : vector<8x128xf32>
    %c6_72 = arith.constant 6 : index
    %c3_73 = arith.constant 3 : index
    %146 = memref.load %arg5[%c6_72, %c3_73] : memref<8x4xf32, #tpu.memory_space<smem>>
    %147 = vector.broadcast %146 : f32 to vector<8x128xf32>
    %148 = arith.mulf %7, %147 : vector<8x128xf32>
    %149 = arith.addf %145, %148 : vector<8x128xf32>
    %c6_74 = arith.constant 6 : index
    %150 = memref.load %arg6[%c6_74] : memref<8xf32, #tpu.memory_space<smem>>
    %151 = vector.broadcast %150 : f32 to vector<8x128xf32>
    %152 = arith.addf %149, %151 : vector<8x128xf32>
    %c7 = arith.constant 7 : index
    %c0_75 = arith.constant 0 : index
    %153 = memref.load %arg5[%c7, %c0_75] : memref<8x4xf32, #tpu.memory_space<smem>>
    %154 = vector.broadcast %153 : f32 to vector<8x128xf32>
    %155 = arith.mulf %1, %154 : vector<8x128xf32>
    %c7_76 = arith.constant 7 : index
    %c1_77 = arith.constant 1 : index
    %156 = memref.load %arg5[%c7_76, %c1_77] : memref<8x4xf32, #tpu.memory_space<smem>>
    %157 = vector.broadcast %156 : f32 to vector<8x128xf32>
    %158 = arith.mulf %3, %157 : vector<8x128xf32>
    %159 = arith.addf %155, %158 : vector<8x128xf32>
    %c7_78 = arith.constant 7 : index
    %c2_79 = arith.constant 2 : index
    %160 = memref.load %arg5[%c7_78, %c2_79] : memref<8x4xf32, #tpu.memory_space<smem>>
    %161 = vector.broadcast %160 : f32 to vector<8x128xf32>
    %162 = arith.mulf %5, %161 : vector<8x128xf32>
    %163 = arith.addf %159, %162 : vector<8x128xf32>
    %c7_80 = arith.constant 7 : index
    %c3_81 = arith.constant 3 : index
    %164 = memref.load %arg5[%c7_80, %c3_81] : memref<8x4xf32, #tpu.memory_space<smem>>
    %165 = vector.broadcast %164 : f32 to vector<8x128xf32>
    %166 = arith.mulf %7, %165 : vector<8x128xf32>
    %167 = arith.addf %163, %166 : vector<8x128xf32>
    %c7_82 = arith.constant 7 : index
    %168 = memref.load %arg6[%c7_82] : memref<8xf32, #tpu.memory_space<smem>>
    %169 = vector.broadcast %168 : f32 to vector<8x128xf32>
    %170 = arith.addf %167, %169 : vector<8x128xf32>
    %171 = tpu.iota {dimensions = array<i32: 1>} : vector<8x8x128xi32>
    %cst = arith.constant 0.000000e+00 : f32
    %172 = vector.broadcast %cst : f32 to vector<8x8x128xf32>
    %c0_i32 = arith.constant 0 : i32
    %173 = vector.broadcast %c0_i32 : i32 to vector<8x8x128xi32>
    %174 = arith.cmpi eq, %171, %173 : vector<8x8x128xi32>
    %175 = vector.shape_cast %44 : vector<8x128xf32> to vector<8x1x128xf32>
    %176 = vector.shape_cast %175 : vector<8x1x128xf32> to vector<8x1x128xf32>
    %177 = vector.broadcast %176 : vector<8x1x128xf32> to vector<8x8x128xf32>
    %178 = arith.select %174, %177, %172 : vector<8x8x128xi1>, vector<8x8x128xf32>
    %c1_i32 = arith.constant 1 : i32
    %179 = vector.broadcast %c1_i32 : i32 to vector<8x8x128xi32>
    %180 = arith.cmpi eq, %171, %179 : vector<8x8x128xi32>
    %181 = vector.shape_cast %62 : vector<8x128xf32> to vector<8x1x128xf32>
    %182 = vector.shape_cast %181 : vector<8x1x128xf32> to vector<8x1x128xf32>
    %183 = vector.broadcast %182 : vector<8x1x128xf32> to vector<8x8x128xf32>
    %184 = arith.select %180, %183, %178 : vector<8x8x128xi1>, vector<8x8x128xf32>
    %c2_i32 = arith.constant 2 : i32
    %185 = vector.broadcast %c2_i32 : i32 to vector<8x8x128xi32>
    %186 = arith.cmpi eq, %171, %185 : vector<8x8x128xi32>
    %187 = vector.shape_cast %80 : vector<8x128xf32> to vector<8x1x128xf32>
    %188 = vector.shape_cast %187 : vector<8x1x128xf32> to vector<8x1x128xf32>
    %189 = vector.broadcast %188 : vector<8x1x128xf32> to vector<8x8x128xf32>
    %190 = arith.select %186, %189, %184 : vector<8x8x128xi1>, vector<8x8x128xf32>
    %c3_i32 = arith.constant 3 : i32
    %191 = vector.broadcast %c3_i32 : i32 to vector<8x8x128xi32>
    %192 = arith.cmpi eq, %171, %191 : vector<8x8x128xi32>
    %193 = vector.shape_cast %98 : vector<8x128xf32> to vector<8x1x128xf32>
    %194 = vector.shape_cast %193 : vector<8x1x128xf32> to vector<8x1x128xf32>
    %195 = vector.broadcast %194 : vector<8x1x128xf32> to vector<8x8x128xf32>
    %196 = arith.select %192, %195, %190 : vector<8x8x128xi1>, vector<8x8x128xf32>
    %c4_i32 = arith.constant 4 : i32
    %197 = vector.broadcast %c4_i32 : i32 to vector<8x8x128xi32>
    %198 = arith.cmpi eq, %171, %197 : vector<8x8x128xi32>
    %199 = vector.shape_cast %116 : vector<8x128xf32> to vector<8x1x128xf32>
    %200 = vector.shape_cast %199 : vector<8x1x128xf32> to vector<8x1x128xf32>
    %201 = vector.broadcast %200 : vector<8x1x128xf32> to vector<8x8x128xf32>
    %202 = arith.select %198, %201, %196 : vector<8x8x128xi1>, vector<8x8x128xf32>
    %c5_i32 = arith.constant 5 : i32
    %203 = vector.broadcast %c5_i32 : i32 to vector<8x8x128xi32>
    %204 = arith.cmpi eq, %171, %203 : vector<8x8x128xi32>
    %205 = vector.shape_cast %134 : vector<8x128xf32> to vector<8x1x128xf32>
    %206 = vector.shape_cast %205 : vector<8x1x128xf32> to vector<8x1x128xf32>
    %207 = vector.broadcast %206 : vector<8x1x128xf32> to vector<8x8x128xf32>
    %208 = arith.select %204, %207, %202 : vector<8x8x128xi1>, vector<8x8x128xf32>
    %c6_i32 = arith.constant 6 : i32
    %209 = vector.broadcast %c6_i32 : i32 to vector<8x8x128xi32>
    %210 = arith.cmpi eq, %171, %209 : vector<8x8x128xi32>
    %211 = vector.shape_cast %152 : vector<8x128xf32> to vector<8x1x128xf32>
    %212 = vector.shape_cast %211 : vector<8x1x128xf32> to vector<8x1x128xf32>
    %213 = vector.broadcast %212 : vector<8x1x128xf32> to vector<8x8x128xf32>
    %214 = arith.select %210, %213, %208 : vector<8x8x128xi1>, vector<8x8x128xf32>
    %c7_i32 = arith.constant 7 : i32
    %215 = vector.broadcast %c7_i32 : i32 to vector<8x8x128xi32>
    %216 = arith.cmpi eq, %171, %215 : vector<8x8x128xi32>
    %217 = vector.shape_cast %170 : vector<8x128xf32> to vector<8x1x128xf32>
    %218 = vector.shape_cast %217 : vector<8x1x128xf32> to vector<8x1x128xf32>
    %219 = vector.broadcast %218 : vector<8x1x128xf32> to vector<8x8x128xf32>
    %220 = arith.select %216, %219, %214 : vector<8x8x128xi1>, vector<8x8x128xf32>
    %c0_83 = arith.constant 0 : index
    %c0_84 = arith.constant 0 : index
    %c0_85 = arith.constant 0 : index
    %221 = vector.load %arg10[%c0_83, %c0_84, %c0_85] : memref<8x8x128xf32, #tpu.memory_space<vmem>>, vector<8x8x128xf32>
    tpu.vector_store %arg10[%c0_83, %c0_84, %c0_85], %220 {strides = array<i32>} : memref<8x8x128xf32, #tpu.memory_space<vmem>>, vector<8x8x128xf32>,
    %c0_86 = arith.constant 0 : index
    %c0_87 = arith.constant 0 : index
    %222 = vector.load %arg1[%c0_86, %c0_87] : memref<8x128xf32, #tpu.memory_space<vmem>>, vector<8x128xf32>
    %223 = arith.subf %25, %222 : vector<8x128xf32>
    %224 = math.absf %223 : vector<8x128xf32>
    %cst_88 = arith.constant 1.000000e+00 : f32
    %225 = vector.broadcast %cst_88 : f32 to vector<8x128xf32>
    %226 = arith.cmpf olt, %224, %225 : vector<8x128xf32>
    %cst_89 = arith.constant 5.000000e-01 : f32
    %227 = vector.broadcast %cst_89 : f32 to vector<8x128xf32>
    %228 = arith.mulf %227, %223 : vector<8x128xf32>
    %229 = arith.mulf %228, %223 : vector<8x128xf32>
    %cst_90 = arith.constant 5.000000e-01 : f32
    %230 = vector.broadcast %cst_90 : f32 to vector<8x128xf32>
    %231 = arith.subf %224, %230 : vector<8x128xf32>
    %232 = arith.select %226, %229, %231 : vector<8x128xi1>, vector<8x128xf32>
    %cst_91 = arith.constant dense<0.000000e+00> : vector<8xf32>
    %233 = vector.multi_reduction <add>, %232, %cst_91 [1] : vector<8x128xf32> to vector<8xf32>
    %234 = vector.shape_cast %233 : vector<8xf32> to vector<8x1xf32>
    %cst_92 = arith.constant 1.280000e+02 : f32
    %235 = vector.broadcast %cst_92 : f32 to vector<8x1xf32>
    %236 = arith.divf %234, %235 : vector<8x1xf32>
    %237 = arith.maximumf %44, %62 : vector<8x128xf32>
    %238 = arith.maximumf %237, %80 : vector<8x128xf32>
    %239 = arith.maximumf %238, %98 : vector<8x128xf32>
    %240 = arith.maximumf %239, %116 : vector<8x128xf32>
    %241 = arith.maximumf %240, %134 : vector<8x128xf32>
    %242 = arith.maximumf %241, %152 : vector<8x128xf32>
    %243 = arith.maximumf %242, %170 : vector<8x128xf32>
    %244 = arith.subf %44, %243 : vector<8x128xf32>
    %245 = math.exp %244 : vector<8x128xf32>
    %246 = arith.subf %62, %243 : vector<8x128xf32>
    %247 = math.exp %246 : vector<8x128xf32>
    %248 = arith.addf %245, %247 : vector<8x128xf32>
    %249 = arith.subf %80, %243 : vector<8x128xf32>
    %250 = math.exp %249 : vector<8x128xf32>
    %251 = arith.addf %248, %250 : vector<8x128xf32>
    %252 = arith.subf %98, %243 : vector<8x128xf32>
    %253 = math.exp %252 : vector<8x128xf32>
    %254 = arith.addf %251, %253 : vector<8x128xf32>
    %255 = arith.subf %116, %243 : vector<8x128xf32>
    %256 = math.exp %255 : vector<8x128xf32>
    %257 = arith.addf %254, %256 : vector<8x128xf32>
    %258 = arith.subf %134, %243 : vector<8x128xf32>
    %259 = math.exp %258 : vector<8x128xf32>
    %260 = arith.addf %257, %259 : vector<8x128xf32>
    %261 = arith.subf %152, %243 : vector<8x128xf32>
    %262 = math.exp %261 : vector<8x128xf32>
    %263 = arith.addf %260, %262 : vector<8x128xf32>
    %264 = arith.subf %170, %243 : vector<8x128xf32>
    %265 = math.exp %264 : vector<8x128xf32>
    %266 = arith.addf %263, %265 : vector<8x128xf32>
    %267 = math.log %266 : vector<8x128xf32>
    %268 = arith.addf %243, %267 : vector<8x128xf32>
    %c0_93 = arith.constant 0 : index
    %c0_94 = arith.constant 0 : index
    %269 = vector.load %arg2[%c0_93, %c0_94] : memref<8x128xi32, #tpu.memory_space<vmem>>, vector<8x128xi32>
    %cst_95 = arith.constant 0.000000e+00 : f32
    %270 = vector.broadcast %cst_95 : f32 to vector<8x128xf32>
    %c0_i32_96 = arith.constant 0 : i32
    %271 = vector.broadcast %c0_i32_96 : i32 to vector<8x128xi32>
    %272 = arith.cmpi eq, %269, %271 : vector<8x128xi32>
    %273 = arith.extui %272 : vector<8x128xi1> to vector<8x128xi32>
    %274 = arith.sitofp %273 : vector<8x128xi32> to vector<8x128xf32>
    %275 = arith.mulf %274, %44 : vector<8x128xf32>
    %276 = arith.addf %270, %275 : vector<8x128xf32>
    %277 = vector.shape_cast %274 : vector<8x128xf32> to vector<1x8x128xf32>
    %cst_97 = arith.constant dense<0.000000e+00> : vector<1xf32>
    %278 = vector.multi_reduction <add>, %277, %cst_97 [1, 2] : vector<1x8x128xf32> to vector<1xf32>
    %279 = vector.shape_cast %278 : vector<1xf32> to vector<1x1x1xf32>
    %280 = vector.extract %279[0, 0, 0] : f32 from vector<1x1x1xf32>
    %c1_i32_98 = arith.constant 1 : i32
    %281 = vector.broadcast %c1_i32_98 : i32 to vector<8x128xi32>
    %282 = arith.cmpi eq, %269, %281 : vector<8x128xi32>
    %283 = arith.extui %282 : vector<8x128xi1> to vector<8x128xi32>
    %284 = arith.sitofp %283 : vector<8x128xi32> to vector<8x128xf32>
    %285 = arith.mulf %284, %62 : vector<8x128xf32>
    %286 = arith.addf %276, %285 : vector<8x128xf32>
    %287 = vector.shape_cast %284 : vector<8x128xf32> to vector<1x8x128xf32>
    %cst_99 = arith.constant dense<0.000000e+00> : vector<1xf32>
    %288 = vector.multi_reduction <add>, %287, %cst_99 [1, 2] : vector<1x8x128xf32> to vector<1xf32>
    %289 = vector.shape_cast %288 : vector<1xf32> to vector<1x1x1xf32>
    %290 = vector.extract %289[0, 0, 0] : f32 from vector<1x1x1xf32>
    %c2_i32_100 = arith.constant 2 : i32
    %291 = vector.broadcast %c2_i32_100 : i32 to vector<8x128xi32>
    %292 = arith.cmpi eq, %269, %291 : vector<8x128xi32>
    %293 = arith.extui %292 : vector<8x128xi1> to vector<8x128xi32>
    %294 = arith.sitofp %293 : vector<8x128xi32> to vector<8x128xf32>
    %295 = arith.mulf %294, %80 : vector<8x128xf32>
    %296 = arith.addf %286, %295 : vector<8x128xf32>
    %297 = vector.shape_cast %294 : vector<8x128xf32> to vector<1x8x128xf32>
    %cst_101 = arith.constant dense<0.000000e+00> : vector<1xf32>
    %298 = vector.multi_reduction <add>, %297, %cst_101 [1, 2] : vector<1x8x128xf32> to vector<1xf32>
    %299 = vector.shape_cast %298 : vector<1xf32> to vector<1x1x1xf32>
    %300 = vector.extract %299[0, 0, 0] : f32 from vector<1x1x1xf32>
    %c3_i32_102 = arith.constant 3 : i32
    %301 = vector.broadcast %c3_i32_102 : i32 to vector<8x128xi32>
    %302 = arith.cmpi eq, %269, %301 : vector<8x128xi32>
    %303 = arith.extui %302 : vector<8x128xi1> to vector<8x128xi32>
    %304 = arith.sitofp %303 : vector<8x128xi32> to vector<8x128xf32>
    %305 = arith.mulf %304, %98 : vector<8x128xf32>
    %306 = arith.addf %296, %305 : vector<8x128xf32>
    %307 = vector.shape_cast %304 : vector<8x128xf32> to vector<1x8x128xf32>
    %cst_103 = arith.constant dense<0.000000e+00> : vector<1xf32>
    %308 = vector.multi_reduction <add>, %307, %cst_103 [1, 2] : vector<1x8x128xf32> to vector<1xf32>
    %309 = vector.shape_cast %308 : vector<1xf32> to vector<1x1x1xf32>
    %310 = vector.extract %309[0, 0, 0] : f32 from vector<1x1x1xf32>
    %c4_i32_104 = arith.constant 4 : i32
    %311 = vector.broadcast %c4_i32_104 : i32 to vector<8x128xi32>
    %312 = arith.cmpi eq, %269, %311 : vector<8x128xi32>
    %313 = arith.extui %312 : vector<8x128xi1> to vector<8x128xi32>
    %314 = arith.sitofp %313 : vector<8x128xi32> to vector<8x128xf32>
    %315 = arith.mulf %314, %116 : vector<8x128xf32>
    %316 = arith.addf %306, %315 : vector<8x128xf32>
    %317 = vector.shape_cast %314 : vector<8x128xf32> to vector<1x8x128xf32>
    %cst_105 = arith.constant dense<0.000000e+00> : vector<1xf32>
    %318 = vector.multi_reduction <add>, %317, %cst_105 [1, 2] : vector<1x8x128xf32> to vector<1xf32>
    %319 = vector.shape_cast %318 : vector<1xf32> to vector<1x1x1xf32>
    %320 = vector.extract %319[0, 0, 0] : f32 from vector<1x1x1xf32>
    %c5_i32_106 = arith.constant 5 : i32
    %321 = vector.broadcast %c5_i32_106 : i32 to vector<8x128xi32>
    %322 = arith.cmpi eq, %269, %321 : vector<8x128xi32>
    %323 = arith.extui %322 : vector<8x128xi1> to vector<8x128xi32>
    %324 = arith.sitofp %323 : vector<8x128xi32> to vector<8x128xf32>
    %325 = arith.mulf %324, %134 : vector<8x128xf32>
    %326 = arith.addf %316, %325 : vector<8x128xf32>
    %327 = vector.shape_cast %324 : vector<8x128xf32> to vector<1x8x128xf32>
    %cst_107 = arith.constant dense<0.000000e+00> : vector<1xf32>
    %328 = vector.multi_reduction <add>, %327, %cst_107 [1, 2] : vector<1x8x128xf32> to vector<1xf32>
    %329 = vector.shape_cast %328 : vector<1xf32> to vector<1x1x1xf32>
    %330 = vector.extract %329[0, 0, 0] : f32 from vector<1x1x1xf32>
    %c6_i32_108 = arith.constant 6 : i32
    %331 = vector.broadcast %c6_i32_108 : i32 to vector<8x128xi32>
    %332 = arith.cmpi eq, %269, %331 : vector<8x128xi32>
    %333 = arith.extui %332 : vector<8x128xi1> to vector<8x128xi32>
    %334 = arith.sitofp %333 : vector<8x128xi32> to vector<8x128xf32>
    %335 = arith.mulf %334, %152 : vector<8x128xf32>
    %336 = arith.addf %326, %335 : vector<8x128xf32>
    %337 = vector.shape_cast %334 : vector<8x128xf32> to vector<1x8x128xf32>
    %cst_109 = arith.constant dense<0.000000e+00> : vector<1xf32>
    %338 = vector.multi_reduction <add>, %337, %cst_109 [1, 2] : vector<1x8x128xf32> to vector<1xf32>
    %339 = vector.shape_cast %338 : vector<1xf32> to vector<1x1x1xf32>
    %340 = vector.extract %339[0, 0, 0] : f32 from vector<1x1x1xf32>
    %c7_i32_110 = arith.constant 7 : i32
    %341 = vector.broadcast %c7_i32_110 : i32 to vector<8x128xi32>
    %342 = arith.cmpi eq, %269, %341 : vector<8x128xi32>
    %343 = arith.extui %342 : vector<8x128xi1> to vector<8x128xi32>
    %344 = arith.sitofp %343 : vector<8x128xi32> to vector<8x128xf32>
    %345 = arith.mulf %344, %170 : vector<8x128xf32>
    %346 = arith.addf %336, %345 : vector<8x128xf32>
    %347 = vector.shape_cast %344 : vector<8x128xf32> to vector<1x8x128xf32>
    %cst_111 = arith.constant dense<0.000000e+00> : vector<1xf32>
    %348 = vector.multi_reduction <add>, %347, %cst_111 [1, 2] : vector<1x8x128xf32> to vector<1xf32>
    %349 = vector.shape_cast %348 : vector<1xf32> to vector<1x1x1xf32>
    %350 = vector.extract %349[0, 0, 0] : f32 from vector<1x1x1xf32>
    %351 = arith.subf %268, %346 : vector<8x128xf32>
    %cst_112 = arith.constant 0.000000e+00 : f32
    %352 = arith.cmpf ogt, %280, %cst_112 : f32
    %cst_113 = arith.constant 1.000000e+00 : f32
    %353 = arith.maximumf %280, %cst_113 : f32
    %cst_114 = arith.constant 1.000000e+00 : f32
    %354 = arith.divf %cst_114, %353 : f32
    %cst_115 = arith.constant 0.000000e+00 : f32
    %355 = arith.select %352, %354, %cst_115 : f32
    %cst_116 = arith.constant 0.000000e+00 : f32
    %356 = arith.cmpf ogt, %290, %cst_116 : f32
    %cst_117 = arith.constant 1.000000e+00 : f32
    %357 = arith.maximumf %290, %cst_117 : f32
    %cst_118 = arith.constant 1.000000e+00 : f32
    %358 = arith.divf %cst_118, %357 : f32
    %cst_119 = arith.constant 0.000000e+00 : f32
    %359 = arith.select %356, %358, %cst_119 : f32
    %cst_120 = arith.constant 0.000000e+00 : f32
    %360 = arith.cmpf ogt, %300, %cst_120 : f32
    %cst_121 = arith.constant 1.000000e+00 : f32
    %361 = arith.maximumf %300, %cst_121 : f32
    %cst_122 = arith.constant 1.000000e+00 : f32
    %362 = arith.divf %cst_122, %361 : f32
    %cst_123 = arith.constant 0.000000e+00 : f32
    %363 = arith.select %360, %362, %cst_123 : f32
    %cst_124 = arith.constant 0.000000e+00 : f32
    %364 = arith.cmpf ogt, %310, %cst_124 : f32
    %cst_125 = arith.constant 1.000000e+00 : f32
    %365 = arith.maximumf %310, %cst_125 : f32
    %cst_126 = arith.constant 1.000000e+00 : f32
    %366 = arith.divf %cst_126, %365 : f32
    %cst_127 = arith.constant 0.000000e+00 : f32
    %367 = arith.select %364, %366, %cst_127 : f32
    %cst_128 = arith.constant 0.000000e+00 : f32
    %368 = arith.cmpf ogt, %320, %cst_128 : f32
    %cst_129 = arith.constant 1.000000e+00 : f32
    %369 = arith.maximumf %320, %cst_129 : f32
    %cst_130 = arith.constant 1.000000e+00 : f32
    %370 = arith.divf %cst_130, %369 : f32
    %cst_131 = arith.constant 0.000000e+00 : f32
    %371 = arith.select %368, %370, %cst_131 : f32
    %cst_132 = arith.constant 0.000000e+00 : f32
    %372 = arith.cmpf ogt, %330, %cst_132 : f32
    %cst_133 = arith.constant 1.000000e+00 : f32
    %373 = arith.maximumf %330, %cst_133 : f32
    %cst_134 = arith.constant 1.000000e+00 : f32
    %374 = arith.divf %cst_134, %373 : f32
    %cst_135 = arith.constant 0.000000e+00 : f32
    %375 = arith.select %372, %374, %cst_135 : f32
    %cst_136 = arith.constant 0.000000e+00 : f32
    %376 = arith.cmpf ogt, %340, %cst_136 : f32
    %cst_137 = arith.constant 1.000000e+00 : f32
    %377 = arith.maximumf %340, %cst_137 : f32
    %cst_138 = arith.constant 1.000000e+00 : f32
    %378 = arith.divf %cst_138, %377 : f32
    %cst_139 = arith.constant 0.000000e+00 : f32
    %379 = arith.select %376, %378, %cst_139 : f32
    %cst_140 = arith.constant 0.000000e+00 : f32
    %380 = arith.cmpf ogt, %350, %cst_140 : f32
    %cst_141 = arith.constant 1.000000e+00 : f32
    %381 = arith.maximumf %350, %cst_141 : f32
    %cst_142 = arith.constant 1.000000e+00 : f32
    %382 = arith.divf %cst_142, %381 : f32
    %cst_143 = arith.constant 0.000000e+00 : f32
    %383 = arith.select %380, %382, %cst_143 : f32
    %cst_144 = arith.constant 0.000000e+00 : f32
    %384 = arith.cmpf ogt, %280, %cst_144 : f32
    %385 = arith.extui %384 : i1 to i32
    %386 = arith.sitofp %385 : i32 to f32
    %387 = arith.addf %355, %359 : f32
    %cst_145 = arith.constant 0.000000e+00 : f32
    %388 = arith.cmpf ogt, %290, %cst_145 : f32
    %389 = arith.extui %388 : i1 to i32
    %390 = arith.sitofp %389 : i32 to f32
    %391 = arith.addf %386, %390 : f32
    %392 = arith.addf %387, %363 : f32
    %cst_146 = arith.constant 0.000000e+00 : f32
    %393 = arith.cmpf ogt, %300, %cst_146 : f32
    %394 = arith.extui %393 : i1 to i32
    %395 = arith.sitofp %394 : i32 to f32
    %396 = arith.addf %391, %395 : f32
    %397 = arith.addf %392, %367 : f32
    %cst_147 = arith.constant 0.000000e+00 : f32
    %398 = arith.cmpf ogt, %310, %cst_147 : f32
    %399 = arith.extui %398 : i1 to i32
    %400 = arith.sitofp %399 : i32 to f32
    %401 = arith.addf %396, %400 : f32
    %402 = arith.addf %397, %371 : f32
    %cst_148 = arith.constant 0.000000e+00 : f32
    %403 = arith.cmpf ogt, %320, %cst_148 : f32
    %404 = arith.extui %403 : i1 to i32
    %405 = arith.sitofp %404 : i32 to f32
    %406 = arith.addf %401, %405 : f32
    %407 = arith.addf %402, %375 : f32
    %cst_149 = arith.constant 0.000000e+00 : f32
    %408 = arith.cmpf ogt, %330, %cst_149 : f32
    %409 = arith.extui %408 : i1 to i32
    %410 = arith.sitofp %409 : i32 to f32
    %411 = arith.addf %406, %410 : f32
    %412 = arith.addf %407, %379 : f32
    %cst_150 = arith.constant 0.000000e+00 : f32
    %413 = arith.cmpf ogt, %340, %cst_150 : f32
    %414 = arith.extui %413 : i1 to i32
    %415 = arith.sitofp %414 : i32 to f32
    %416 = arith.addf %411, %415 : f32
    %417 = arith.addf %412, %383 : f32
    %cst_151 = arith.constant 0.000000e+00 : f32
    %418 = arith.cmpf ogt, %350, %cst_151 : f32
    %419 = arith.extui %418 : i1 to i32
    %420 = arith.sitofp %419 : i32 to f32
    %421 = arith.addf %416, %420 : f32
    %cst_152 = arith.constant 1.000000e+00 : f32
    %422 = arith.cmpf ole, %421, %cst_152 : f32
    %423 = arith.divf %355, %417 : f32
    %cst_153 = arith.constant 1.000000e+00 : f32
    %424 = arith.select %422, %cst_153, %423 : f32
    %425 = arith.divf %359, %417 : f32
    %cst_154 = arith.constant 1.000000e+00 : f32
    %426 = arith.select %422, %cst_154, %425 : f32
    %427 = arith.divf %363, %417 : f32
    %cst_155 = arith.constant 1.000000e+00 : f32
    %428 = arith.select %422, %cst_155, %427 : f32
    %429 = arith.divf %367, %417 : f32
    %cst_156 = arith.constant 1.000000e+00 : f32
    %430 = arith.select %422, %cst_156, %429 : f32
    %431 = arith.divf %371, %417 : f32
    %cst_157 = arith.constant 1.000000e+00 : f32
    %432 = arith.select %422, %cst_157, %431 : f32
    %433 = arith.divf %375, %417 : f32
    %cst_158 = arith.constant 1.000000e+00 : f32
    %434 = arith.select %422, %cst_158, %433 : f32
    %435 = arith.divf %379, %417 : f32
    %cst_159 = arith.constant 1.000000e+00 : f32
    %436 = arith.select %422, %cst_159, %435 : f32
    %437 = arith.divf %383, %417 : f32
    %cst_160 = arith.constant 1.000000e+00 : f32
    %438 = arith.select %422, %cst_160, %437 : f32
    %cst_161 = arith.constant 0.000000e+00 : f32
    %439 = vector.broadcast %cst_161 : f32 to vector<8x128xf32>
    %c0_i32_162 = arith.constant 0 : i32
    %440 = vector.broadcast %c0_i32_162 : i32 to vector<8x128xi32>
    %441 = arith.cmpi eq, %269, %440 : vector<8x128xi32>
    %442 = arith.extui %441 : vector<8x128xi1> to vector<8x128xi32>
    %443 = arith.sitofp %442 : vector<8x128xi32> to vector<8x128xf32>
    %444 = vector.broadcast %424 : f32 to vector<8x128xf32>
    %445 = arith.mulf %443, %444 : vector<8x128xf32>
    %446 = arith.addf %439, %445 : vector<8x128xf32>
    %c1_i32_163 = arith.constant 1 : i32
    %447 = vector.broadcast %c1_i32_163 : i32 to vector<8x128xi32>
    %448 = arith.cmpi eq, %269, %447 : vector<8x128xi32>
    %449 = arith.extui %448 : vector<8x128xi1> to vector<8x128xi32>
    %450 = arith.sitofp %449 : vector<8x128xi32> to vector<8x128xf32>
    %451 = vector.broadcast %426 : f32 to vector<8x128xf32>
    %452 = arith.mulf %450, %451 : vector<8x128xf32>
    %453 = arith.addf %446, %452 : vector<8x128xf32>
    %c2_i32_164 = arith.constant 2 : i32
    %454 = vector.broadcast %c2_i32_164 : i32 to vector<8x128xi32>
    %455 = arith.cmpi eq, %269, %454 : vector<8x128xi32>
    %456 = arith.extui %455 : vector<8x128xi1> to vector<8x128xi32>
    %457 = arith.sitofp %456 : vector<8x128xi32> to vector<8x128xf32>
    %458 = vector.broadcast %428 : f32 to vector<8x128xf32>
    %459 = arith.mulf %457, %458 : vector<8x128xf32>
    %460 = arith.addf %453, %459 : vector<8x128xf32>
    %c3_i32_165 = arith.constant 3 : i32
    %461 = vector.broadcast %c3_i32_165 : i32 to vector<8x128xi32>
    %462 = arith.cmpi eq, %269, %461 : vector<8x128xi32>
    %463 = arith.extui %462 : vector<8x128xi1> to vector<8x128xi32>
    %464 = arith.sitofp %463 : vector<8x128xi32> to vector<8x128xf32>
    %465 = vector.broadcast %430 : f32 to vector<8x128xf32>
    %466 = arith.mulf %464, %465 : vector<8x128xf32>
    %467 = arith.addf %460, %466 : vector<8x128xf32>
    %c4_i32_166 = arith.constant 4 : i32
    %468 = vector.broadcast %c4_i32_166 : i32 to vector<8x128xi32>
    %469 = arith.cmpi eq, %269, %468 : vector<8x128xi32>
    %470 = arith.extui %469 : vector<8x128xi1> to vector<8x128xi32>
    %471 = arith.sitofp %470 : vector<8x128xi32> to vector<8x128xf32>
    %472 = vector.broadcast %432 : f32 to vector<8x128xf32>
    %473 = arith.mulf %471, %472 : vector<8x128xf32>
    %474 = arith.addf %467, %473 : vector<8x128xf32>
    %c5_i32_167 = arith.constant 5 : i32
    %475 = vector.broadcast %c5_i32_167 : i32 to vector<8x128xi32>
    %476 = arith.cmpi eq, %269, %475 : vector<8x128xi32>
    %477 = arith.extui %476 : vector<8x128xi1> to vector<8x128xi32>
    %478 = arith.sitofp %477 : vector<8x128xi32> to vector<8x128xf32>
    %479 = vector.broadcast %434 : f32 to vector<8x128xf32>
    %480 = arith.mulf %478, %479 : vector<8x128xf32>
    %481 = arith.addf %474, %480 : vector<8x128xf32>
    %c6_i32_168 = arith.constant 6 : i32
    %482 = vector.broadcast %c6_i32_168 : i32 to vector<8x128xi32>
    %483 = arith.cmpi eq, %269, %482 : vector<8x128xi32>
    %484 = arith.extui %483 : vector<8x128xi1> to vector<8x128xi32>
    %485 = arith.sitofp %484 : vector<8x128xi32> to vector<8x128xf32>
    %486 = vector.broadcast %436 : f32 to vector<8x128xf32>
    %487 = arith.mulf %485, %486 : vector<8x128xf32>
    %488 = arith.addf %481, %487 : vector<8x128xf32>
    %c7_i32_169 = arith.constant 7 : i32
    %489 = vector.broadcast %c7_i32_169 : i32 to vector<8x128xi32>
    %490 = arith.cmpi eq, %269, %489 : vector<8x128xi32>
    %491 = arith.extui %490 : vector<8x128xi1> to vector<8x128xi32>
    %492 = arith.sitofp %491 : vector<8x128xi32> to vector<8x128xf32>
    %493 = vector.broadcast %438 : f32 to vector<8x128xf32>
    %494 = arith.mulf %492, %493 : vector<8x128xf32>
    %495 = arith.addf %488, %494 : vector<8x128xf32>
    %496 = arith.mulf %495, %351 : vector<8x128xf32>
    %cst_170 = arith.constant dense<0.000000e+00> : vector<8xf32>
    %497 = vector.multi_reduction <add>, %496, %cst_170 [1] : vector<8x128xf32> to vector<8xf32>
    %498 = vector.shape_cast %497 : vector<8xf32> to vector<8x1xf32>
    %cst_171 = arith.constant 1.280000e+02 : f32
    %499 = vector.broadcast %cst_171 : f32 to vector<8x1xf32>
    %500 = arith.divf %498, %499 : vector<8x1xf32>
    %c0_172 = arith.constant 0 : index
    %501 = memref.load %arg7[%c0_172] : memref<2xf32, #tpu.memory_space<smem>>
    %c1_173 = arith.constant 1 : index
    %502 = memref.load %arg7[%c1_173] : memref<2xf32, #tpu.memory_space<smem>>
    %cst_174 = arith.constant 0.000000e+00 : f32
    %503 = arith.subf %cst_174, %501 : f32
    %504 = math.exp %503 : f32
    %cst_175 = arith.constant 0.000000e+00 : f32
    %505 = arith.subf %cst_175, %502 : f32
    %506 = math.exp %505 : f32
    %cst_176 = arith.constant 5.000000e-01 : f32
    %507 = arith.mulf %cst_176, %504 : f32
    %508 = vector.broadcast %507 : f32 to vector<8x1xf32>
    %509 = arith.mulf %508, %236 : vector<8x1xf32>
    %cst_177 = arith.constant 5.000000e-01 : f32
    %510 = arith.mulf %cst_177, %501 : f32
    %511 = vector.broadcast %510 : f32 to vector<8x1xf32>
    %512 = arith.addf %509, %511 : vector<8x1xf32>
    %513 = vector.broadcast %506 : f32 to vector<8x1xf32>
    %514 = arith.mulf %513, %500 : vector<8x1xf32>
    %515 = arith.addf %512, %514 : vector<8x1xf32>
    %cst_178 = arith.constant 5.000000e-01 : f32
    %516 = arith.mulf %cst_178, %502 : f32
    %517 = vector.broadcast %516 : f32 to vector<8x1xf32>
    %518 = arith.addf %515, %517 : vector<8x1xf32>
    %519 = vector.shape_cast %518 : vector<8x1xf32> to vector<1x8x1xf32>
    %cst_179 = arith.constant dense<0.000000e+00> : vector<1xf32>
    %520 = vector.multi_reduction <add>, %519, %cst_179 [1, 2] : vector<1x8x1xf32> to vector<1xf32>
    %521 = vector.shape_cast %520 : vector<1xf32> to vector<1x1x1xf32>
    %522 = vector.extract %521[0, 0, 0] : f32 from vector<1x1x1xf32>
    %cst_180 = arith.constant 8.000000e+00 : f32
    %523 = arith.divf %522, %cst_180 : f32
    %c0_181 = arith.constant 0 : index
    %c0_182 = arith.constant 0 : index
    %524 = memref.load %arg8[%c0_181, %c0_182] : memref<1x1xf32, #tpu.memory_space<smem>>
    memref.store %523, %arg8[%c0_181, %c0_182] : memref<1x1xf32, #tpu.memory_space<smem>>
    return
  }
}

</mosaic_0001>

<llo_original>
// kernel: tpu_custom_call.1
$region0: #{tpu_custom_call.1}
  #allocation0 [shape = 'u32[]', space=smem, size = 0x4, offset = 0x4, fixed_abs, tag = 'smem constant byte address 0x4 - core index']
  #allocation1 [shape = 'u32[144,128]{1,0:T(1,128)}', space=vmem, size = 0x12000, scoped, tag = 'internal scratch']
  #allocation2 [shape = 'f32[1]{0:T(128)S(6)}', space=smem, size = 0x200, scoped, tag = 'scoped memory for tpu_custom_call.1']
  %s0 = inlined_call_operand.hbm [shape: f32[4,8,128], index: 0, kind: input, shape index: {}]
  %s1 = inlined_call_operand.vmem [shape: f32[8,128], index: 1, kind: input, shape index: {}]
  %s2 = inlined_call_operand.vmem [shape: s32[8,128], index: 2, kind: input, shape index: {}]
  %s3 = inlined_call_operand.vmem [shape: f32[4], index: 3, kind: input, shape index: {}]
  %s4 = inlined_call_operand.<no memory space> [shape: f32[1], index: 4, kind: input, shape index: {}]
  %s5 = inlined_call_operand.vmem [shape: f32[8,4], index: 5, kind: input, shape index: {}]
  %s6 = inlined_call_operand.vmem [shape: f32[8], index: 6, kind: input, shape index: {}]
  %s7 = inlined_call_operand.vmem [shape: f32[2], index: 7, kind: input, shape index: {}]
  %s8 = inlined_call_operand.hbm [shape: f32[1,1], index: 8, kind: output, shape index: {0}]
  %s9 = inlined_call_operand.hbm [shape: f32[8,128], index: 9, kind: output, shape index: {1}]
  %s10 = inlined_call_operand.hbm [shape: f32[8,8,128], index: 10, kind: output, shape index: {2}]
  %11 = xla_tuple %s8, %s9, %s10
  %s12 = sld [smem:[#allocation0]]
  $region78: #{tpu_custom_call.1} parent=0
    _
  %s14 = ssub.s32 1, %s12
  %s15 = scalar_select 0, %s14, %s12
  %16 = sst [smem:[#allocation2]] %s4
  $region1: #{tpu_custom_call.1} parent=0
    #allocation3 [shape = 'u8[16384]{0}', space=vmem, size = 0x4000, scoped, tag = 'input window, operand 0, single buffered']
    #allocation4 [shape = 's32[1]{0}', space=sflag, size = 0x4, scoped, tag = 'scoped memory for tpu_custom_call.1']
    #allocation5 [shape = 's32[1]{0}', space=sflag, size = 0x4, scoped, tag = 'scoped memory for tpu_custom_call.1']
    #allocation6 [shape = 's32[1]{0}', space=sflag, size = 0x4, scoped, tag = 'scoped memory for tpu_custom_call.1']
    #allocation7 [shape = 's32[1]{0}', space=sflag, size = 0x4, scoped, tag = 'scoped memory for tpu_custom_call.1']
    #allocation8 [shape = 'u8[512]{0}', space=smem, size = 0x200, scoped, tag = 'input window, operand 3, single buffered']
    #allocation9 [shape = 'u8[4096]{0}', space=smem, size = 0x1000, scoped, tag = 'input window, operand 5, single buffered']
    #allocation10 [shape = 's32[1]{0}', space=sflag, size = 0x4, scoped, tag = 'scoped memory for tpu_custom_call.1']
    #allocation11 [shape = 'u8[512]{0}', space=smem, size = 0x200, scoped, tag = 'input window, operand 6, single buffered']
    #allocation12 [shape = 'u8[512]{0}', space=smem, size = 0x200, scoped, tag = 'input window, operand 7, single buffered']
    #allocation13 [shape = 's32[1]{0}', space=sflag, size = 0x4, scoped, tag = 'scoped memory for tpu_custom_call.1']
    #allocation14 [shape = 'u8[512]{0}', space=smem, size = 0x200, scoped, tag = 'output window, operand 0, single buffered']
    #allocation15 [shape = 'u8[4096]{0}', space=vmem, size = 0x1000, scoped, tag = 'output window, operand 1, single buffered']
    #allocation16 [shape = 'u8[32768]{0}', space=vmem, size = 0x8000, scoped, tag = 'output window, operand 2, single buffered']
    #allocation17 [shape = 's32[1]{0}', space=sflag, size = 0x4, scoped, tag = 'scoped memory for tpu_custom_call.1']
    %17 = vsyncpa [#allocation4], 0
    %18 = vsyncpa [#allocation7], 0
    %19 = vsyncpa [#allocation10], 0
    %20 = vsyncpa [#allocation13], 0
    %21 = vsyncpa [#allocation6], 0
    %22 = vsyncpa [#allocation5], 0
    %23 = vsyncpa [#allocation17], 0
    // Predicated region
    $region2: #{tpu_custom_call.1} parent=1 // pred_check
      _
    $region3: #{tpu_custom_call.1} parent=1 // pred_check_branch
      %25 = sbr.rel (0) target = $region5
    $region4: #{tpu_custom_call.1} parent=1 // pred_region
      %s27 = ssub.s32 512, 512
      %28 = vsyncadd [#allocation4], %s27
      %s29 = sshll.u32 [#allocation3], 4
      %s30 = int_to_ptr.vmem [resolvable:$true] %s29
      %35 = dma.hbm_to_vmem [thread:$0]  %s0, 512, %s30, [#allocation4], 128, 128, 8
    $region5: #{tpu_custom_call.1} parent=1 // pred_fallthru
      _
    // Predicated region
    $region6: #{tpu_custom_call.1} parent=1 // pred_check
      _
    $region7: #{tpu_custom_call.1} parent=1 // pred_check_branch
      %37 = sbr.rel (0) target = $region9
    $region8: #{tpu_custom_call.1} parent=1 // pred_region
      _
    $region9: #{tpu_custom_call.1} parent=1 // pred_fallthru
      _
    // Predicated region
    $region10: #{tpu_custom_call.1} parent=1 // pred_check
      _
    $region11: #{tpu_custom_call.1} parent=1 // pred_check_branch
      %39 = sbr.rel (0) target = $region13
    $region12: #{tpu_custom_call.1} parent=1 // pred_region
      _
    $region13: #{tpu_custom_call.1} parent=1 // pred_fallthru
      _
    // Predicated region
    $region14: #{tpu_custom_call.1} parent=1 // pred_check
      _
    $region15: #{tpu_custom_call.1} parent=1 // pred_check_branch
      %41 = sbr.rel (0) target = $region17
    $region16: #{tpu_custom_call.1} parent=1 // pred_region
      %s43 = ssub.s32 16, 16
      %44 = vsyncadd [#allocation7], %s43
      %s46 = sshll.u32 %s3, 4
      %s47 = int_to_ptr.vmem [resolvable:$true] %s46
      %49 = dma.vmem_to_smem %s47, 16, [#allocation8], [#allocation7]
    $region17: #{tpu_custom_call.1} parent=1 // pred_fallthru
      _
    // Predicated region
    $region18: #{tpu_custom_call.1} parent=1 // pred_check
      _
    $region19: #{tpu_custom_call.1} parent=1 // pred_check_branch
      %51 = sbr.rel (0) target = $region21
    $region20: #{tpu_custom_call.1} parent=1 // pred_region
      _
    $region21: #{tpu_custom_call.1} parent=1 // pred_fallthru
      _
    // Predicated region
    $region22: #{tpu_custom_call.1} parent=1 // pred_check
      _
    $region23: #{tpu_custom_call.1} parent=1 // pred_check_branch
      %53 = sbr.rel (0) target = $region25
    $region24: #{tpu_custom_call.1} parent=1 // pred_region
      %s55 = ssub.s32 128, 128
      %56 = vsyncadd [#allocation10], %s55
      %s58 = sshll.u32 %s5, 4
      %s59 = int_to_ptr.vmem [resolvable:$true] %s58
      %61 = dma.vmem_to_smem %s59, 128, [#allocation9], [#allocation10]
    $region25: #{tpu_custom_call.1} parent=1 // pred_fallthru
      _
    // Predicated region
    $region26: #{tpu_custom_call.1} parent=1 // pred_check
      _
    $region27: #{tpu_custom_call.1} parent=1 // pred_check_branch
      %63 = sbr.rel (0) target = $region29
    $region28: #{tpu_custom_call.1} parent=1 // pred_region
      %s65 = ssub.s32 16, 16
      %66 = vsyncadd [#allocation10], %s65
      %s68 = sshll.u32 %s6, 4
      %s69 = int_to_ptr.vmem [resolvable:$true] %s68
      %71 = dma.vmem_to_smem %s69, 16, [#allocation11], [#allocation10]
    $region29: #{tpu_custom_call.1} parent=1 // pred_fallthru
      _
    // Predicated region
    $region30: #{tpu_custom_call.1} parent=1 // pred_check
      _
    $region31: #{tpu_custom_call.1} parent=1 // pred_check_branch
      %73 = sbr.rel (0) target = $region33
    $region32: #{tpu_custom_call.1} parent=1 // pred_region
      %s75 = ssub.s32 16, 16
      %76 = vsyncadd [#allocation13], %s75
      %s78 = sshll.u32 %s7, 4
      %s79 = int_to_ptr.vmem [resolvable:$true] %s78
      %81 = dma.vmem_to_smem %s79, 16, [#allocation12], [#allocation13]
    $region33: #{tpu_custom_call.1} parent=1 // pred_fallthru
      _
    // Predicated region
    $region34: #{tpu_custom_call.1} parent=1 // pred_check
      _
    $region35: #{tpu_custom_call.1} parent=1 // pred_check_branch
      %83 = sbr.rel (0) target = $region37
    $region36: #{tpu_custom_call.1} parent=1 // pred_region
      %84 = dma.done [#allocation4], 512
    $region37: #{tpu_custom_call.1} parent=1 // pred_fallthru
      _
    // Predicated region
    $region38: #{tpu_custom_call.1} parent=1 // pred_check
      _
    $region39: #{tpu_custom_call.1} parent=1 // pred_check_branch
      %86 = sbr.rel (0) target = $region41
    $region40: #{tpu_custom_call.1} parent=1 // pred_region
      %87 = dma.done [#allocation7], 16
    $region41: #{tpu_custom_call.1} parent=1 // pred_fallthru
      _
    // Predicated region
    $region42: #{tpu_custom_call.1} parent=1 // pred_check
      _
    $region43: #{tpu_custom_call.1} parent=1 // pred_check_branch
      %89 = sbr.rel (0) target = $region45
    $region44: #{tpu_custom_call.1} parent=1 // pred_region
      %90 = dma.done [#allocation10], 128
    $region45: #{tpu_custom_call.1} parent=1 // pred_fallthru
      _
    // Predicated region
    $region46: #{tpu_custom_call.1} parent=1 // pred_check
      _
    $region47: #{tpu_custom_call.1} parent=1 // pred_check_branch
      %92 = sbr.rel (0) target = $region49
    $region48: #{tpu_custom_call.1} parent=1 // pred_region
      %93 = dma.done [#allocation10], 16
    $region49: #{tpu_custom_call.1} parent=1 // pred_fallthru
      _
    // Predicated region
    $region50: #{tpu_custom_call.1} parent=1 // pred_check
      _
    $region51: #{tpu_custom_call.1} parent=1 // pred_check_branch
      %95 = sbr.rel (0) target = $region53
    $region52: #{tpu_custom_call.1} parent=1 // pred_region
      %96 = dma.done [#allocation13], 16
    $region53: #{tpu_custom_call.1} parent=1 // pred_fallthru
      _
    %97 = sfence
    %v98 = vld [vmem:[#allocation3] sm:$0xff]
    %s99 = scalar_lea.vmem [#allocation3], 8
    %v100 = vld [vmem:[%s99] sm:$0xff]
    %s101 = scalar_lea.vmem [#allocation3], 16
    %v102 = vld [vmem:[%s101] sm:$0xff]
    %s103 = scalar_lea.vmem [#allocation3], 24
    %v104 = vld [vmem:[%s103] sm:$0xff]
    %s105 = sld [smem:[#allocation8]]
    %v106 = vstv %s105
    %v107 = vmul.f32 %v98, %v106
    %s108 = sld [smem:[#allocation8 + $0x1]]
    %v109 = vstv %s108
    %v110 = vmul.f32 %v100, %v109
    %v111 = vadd.f32 %v107, %v110
    %s112 = sld [smem:[#allocation8 + $0x2]]
    %v113 = vstv %s112
    %v114 = vmul.f32 %v102, %v113
    %v115 = vadd.f32 %v111, %v114
    %s116 = sld [smem:[#allocation8 + $0x3]]
    %v117 = vstv %s116
    %v118 = vmul.f32 %v104, %v117
    %v119 = vadd.f32 %v115, %v118
    %s120 = sld [smem:[#allocation2]]
    %v121 = vstv %s120
    %v122 = vadd.f32 %v119, %v121
    %123 = vst [vmem:[#allocation15] sm:$0xff] %v122
    %s124 = sld [smem:[#allocation9]]
    %v125 = vstv %s124
    %v126 = vmul.f32 %v98, %v125
    %s127 = sld [smem:[#allocation9 + $0x1]]
    %v128 = vstv %s127
    %v129 = vmul.f32 %v100, %v128
    %v130 = vadd.f32 %v126, %v129
    %s131 = sld [smem:[#allocation9 + $0x2]]
    %v132 = vstv %s131
    %v133 = vmul.f32 %v102, %v132
    %v134 = vadd.f32 %v130, %v133
    %s135 = sld [smem:[#allocation9 + $0x3]]
    %v136 = vstv %s135
    %v137 = vmul.f32 %v104, %v136
    %v138 = vadd.f32 %v134, %v137
    %s139 = sld [smem:[#allocation11]]
    %v140 = vstv %s139
    %v141 = vadd.f32 %v138, %v140
    %s142 = sld [smem:[#allocation9 + $0x80]]
    %v143 = vstv %s142
    %v144 = vmul.f32 %v98, %v143
    %s145 = sld [smem:[#allocation9 + $0x81]]
    %v146 = vstv %s145
    %v147 = vmul.f32 %v100, %v146
    %v148 = vadd.f32 %v144, %v147
    %s149 = sld [smem:[#allocation9 + $0x82]]
    %v150 = vstv %s149
    %v151 = vmul.f32 %v102, %v150
    %v152 = vadd.f32 %v148, %v151
    %s153 = sld [smem:[#allocation9 + $0x83]]
    %v154 = vstv %s153
    %v155 = vmul.f32 %v104, %v154
    %v156 = vadd.f32 %v152, %v155
    %s157 = sld [smem:[#allocation11 + $0x1]]
    %v158 = vstv %s157
    %v159 = vadd.f32 %v156, %v158
    %s160 = sld [smem:[#allocation9 + $0x100]]
    %v161 = vstv %s160
    %v162 = vmul.f32 %v98, %v161
    %s163 = sld [smem:[#allocation9 + $0x101]]
    %v164 = vstv %s163
    %v165 = vmul.f32 %v100, %v164
    %v166 = vadd.f32 %v162, %v165
    %s167 = sld [smem:[#allocation9 + $0x102]]
    %v168 = vstv %s167
    %v169 = vmul.f32 %v102, %v168
    %v170 = vadd.f32 %v166, %v169
    %s171 = sld [smem:[#allocation9 + $0x103]]
    %v172 = vstv %s171
    %v173 = vmul.f32 %v104, %v172
    %v174 = vadd.f32 %v170, %v173
    %s175 = sld [smem:[#allocation11 + $0x2]]
    %v176 = vstv %s175
    %v177 = vadd.f32 %v174, %v176
    %s178 = sld [smem:[#allocation9 + $0x180]]
    %v179 = vstv %s178
    %v180 = vmul.f32 %v98, %v179
    %s181 = sld [smem:[#allocation9 + $0x181]]
    %v182 = vstv %s181
    %v183 = vmul.f32 %v100, %v182
    %v184 = vadd.f32 %v180, %v183
    %s185 = sld [smem:[#allocation9 + $0x182]]
    %v186 = vstv %s185
    %v187 = vmul.f32 %v102, %v186
    %v188 = vadd.f32 %v184, %v187
    %s189 = sld [smem:[#allocation9 + $0x183]]
    %v190 = vstv %s189
    %v191 = vmul.f32 %v104, %v190
    %v192 = vadd.f32 %v188, %v191
    %s193 = sld [smem:[#allocation11 + $0x3]]
    %v194 = vstv %s193
    %v195 = vadd.f32 %v192, %v194
    %s196 = sld [smem:[#allocation9 + $0x200]]
    %v197 = vstv %s196
    %v198 = vmul.f32 %v98, %v197
    %s199 = sld [smem:[#allocation9 + $0x201]]
    %v200 = vstv %s199
    %v201 = vmul.f32 %v100, %v200
    %v202 = vadd.f32 %v198, %v201
    %s203 = sld [smem:[#allocation9 + $0x202]]
    %v204 = vstv %s203
    %v205 = vmul.f32 %v102, %v204
    %v206 = vadd.f32 %v202, %v205
    %s207 = sld [smem:[#allocation9 + $0x203]]
    %v208 = vstv %s207
    %v209 = vmul.f32 %v104, %v208
    %v210 = vadd.f32 %v206, %v209
    %s211 = sld [smem:[#allocation11 + $0x4]]
    %v212 = vstv %s211
    %v213 = vadd.f32 %v210, %v212
    %s214 = sld [smem:[#allocation9 + $0x280]]
    %v215 = vstv %s214
    %v216 = vmul.f32 %v98, %v215
    %s217 = sld [smem:[#allocation9 + $0x281]]
    %v218 = vstv %s217
    %v219 = vmul.f32 %v100, %v218
    %v220 = vadd.f32 %v216, %v219
    %s221 = sld [smem:[#allocation9 + $0x282]]
    %v222 = vstv %s221
    %v223 = vmul.f32 %v102, %v222
    %v224 = vadd.f32 %v220, %v223
    %s225 = sld [smem:[#allocation9 + $0x283]]
    %v226 = vstv %s225
    %v227 = vmul.f32 %v104, %v226
    %v228 = vadd.f32 %v224, %v227
    %s229 = sld [smem:[#allocation11 + $0x5]]
    %v230 = vstv %s229
    %v231 = vadd.f32 %v228, %v230
    %s232 = sld [smem:[#allocation9 + $0x300]]
    %v233 = vstv %s232
    %v234 = vmul.f32 %v98, %v233
    %s235 = sld [smem:[#allocation9 + $0x301]]
    %v236 = vstv %s235
    %v237 = vmul.f32 %v100, %v236
    %v238 = vadd.f32 %v234, %v237
    %s239 = sld [smem:[#allocation9 + $0x302]]
    %v240 = vstv %s239
    %v241 = vmul.f32 %v102, %v240
    %v242 = vadd.f32 %v238, %v241
    %s243 = sld [smem:[#allocation9 + $0x303]]
    %v244 = vstv %s243
    %v245 = vmul.f32 %v104, %v244
    %v246 = vadd.f32 %v242, %v245
    %s247 = sld [smem:[#allocation11 + $0x6]]
    %v248 = vstv %s247
    %v249 = vadd.f32 %v246, %v248
    %s250 = sld [smem:[#allocation9 + $0x380]]
    %v251 = vstv %s250
    %v252 = vmul.f32 %v98, %v251
    %s253 = sld [smem:[#allocation9 + $0x381]]
    %v254 = vstv %s253
    %v255 = vmul.f32 %v100, %v254
    %v256 = vadd.f32 %v252, %v255
    %s257 = sld [smem:[#allocation9 + $0x382]]
    %v258 = vstv %s257
    %v259 = vmul.f32 %v102, %v258
    %v260 = vadd.f32 %v256, %v259
    %s261 = sld [smem:[#allocation9 + $0x383]]
    %v262 = vstv %s261
    %v263 = vmul.f32 %v104, %v262
    %v264 = vadd.f32 %v260, %v263
    %s265 = sld [smem:[#allocation11 + $0x7]]
    %v266 = vstv %s265
    %v267 = vadd.f32 %v264, %v266
    %v268 = vlaneseq
    %v269 = vshrl.u32 %v268, 7
    %vm270 = vcmp.eq.s32.totalorder %v269, 0
    %v272 = vcombine.high %v141, %v141
    %v274 = vunpack.c.l.s4 1966171168
    %v275 = vunpack.c.0.s8 %v274
    %v276 = vlaneseq
    %v277 = vshrl.u32 %v276, 7
    %v278 = vsub.s32 %v275, %v277
    %v279 = vrot.slane %v141, %v278
    %v281 = vunpack.c.l.s4 1966171168
    %v282 = vunpack.c.0.s8 %v281
    %v283 = vlaneseq
    %v284 = vshrl.u32 %v283, 7
    %v285 = vsub.s32 %v282, %v284
    %v286 = vrot.slane %v272, %v285
    %v287 = vcombine.high %v279, %v279
    %v288 = vcombine.high %v286, %v286
    %v290 = vunpack.c.l.s4 1966171168
    %v291 = vunpack.c.0.s8 %v290
    %v292 = vlaneseq
    %v293 = vshrl.u32 %v292, 7
    %v294 = vsub.s32 %v291, %v293
    %v295 = vrot.slane %v279, %v294
    %v297 = vunpack.c.l.s4 1966171168
    %v298 = vunpack.c.0.s8 %v297
    %v299 = vlaneseq
    %v300 = vshrl.u32 %v299, 7
    %v301 = vsub.s32 %v298, %v300
    %v302 = vrot.slane %v286, %v301
    %v304 = vunpack.c.l.s4 1966171168
    %v305 = vunpack.c.0.s8 %v304
    %v306 = vlaneseq
    %v307 = vshrl.u32 %v306, 7
    %v308 = vsub.s32 %v305, %v307
    %v309 = vrot.slane %v287, %v308
    %v311 = vunpack.c.l.s4 1966171168
    %v312 = vunpack.c.0.s8 %v311
    %v313 = vlaneseq
    %v314 = vshrl.u32 %v313, 7
    %v315 = vsub.s32 %v312, %v314
    %v316 = vrot.slane %v288, %v315
    %v317 = vcombine.high %v295, %v295
    %v318 = vcombine.high %v302, %v302
    %v319 = vcombine.high %v309, %v309
    %v320 = vcombine.high %v316, %v316
    %v321 = vlaneseq
    %v322 = vshrl.u32 %v321, 7
    %v323 = vsub.s32 0, %v322
    %v324 = vrot.slane %v295, %v323
    %v325 = vlaneseq
    %v326 = vshrl.u32 %v325, 7
    %v327 = vsub.s32 0, %v326
    %v328 = vrot.slane %v309, %v327
    %v329 = vlaneseq
    %v330 = vshrl.u32 %v329, 7
    %v331 = vsub.s32 0, %v330
    %v332 = vrot.slane %v317, %v331
    %v333 = vlaneseq
    %v334 = vshrl.u32 %v333, 7
    %v335 = vsub.s32 0, %v334
    %v336 = vrot.slane %v319, %v335
    %v337 = vlaneseq
    %v338 = vshrl.u32 %v337, 7
    %v339 = vsub.s32 0, %v338
    %v340 = vrot.slane %v302, %v339
    %v341 = vlaneseq
    %v342 = vshrl.u32 %v341, 7
    %v343 = vsub.s32 0, %v342
    %v344 = vrot.slane %v316, %v343
    %v345 = vlaneseq
    %v346 = vshrl.u32 %v345, 7
    %v347 = vsub.s32 0, %v346
    %v348 = vrot.slane %v318, %v347
    %v349 = vlaneseq
    %v350 = vshrl.u32 %v349, 7
    %v351 = vsub.s32 0, %v350
    %v352 = vrot.slane %v320, %v351
    %v361 = vsel %vm270, %v324, 0.0
    %v362 = vsel %vm270, %v328, 0.0
    %v363 = vsel %vm270, %v332, 0.0
    %v364 = vsel %vm270, %v336, 0.0
    %v365 = vsel %vm270, %v340, 0.0
    %v366 = vsel %vm270, %v344, 0.0
    %v367 = vsel %vm270, %v348, 0.0
    %v368 = vsel %vm270, %v352, 0.0
    %vm369 = vcmp.eq.s32.totalorder %v269, 1
    %v371 = vcombine.high %v159, %v159
    %v373 = vunpack.c.l.s4 1966171168
    %v374 = vunpack.c.0.s8 %v373
    %v375 = vlaneseq
    %v376 = vshrl.u32 %v375, 7
    %v377 = vsub.s32 %v374, %v376
    %v378 = vrot.slane %v159, %v377
    %v380 = vunpack.c.l.s4 1966171168
    %v381 = vunpack.c.0.s8 %v380
    %v382 = vlaneseq
    %v383 = vshrl.u32 %v382, 7
    %v384 = vsub.s32 %v381, %v383
    %v385 = vrot.slane %v371, %v384
    %v386 = vcombine.high %v378, %v378
    %v387 = vcombine.high %v385, %v385
    %v389 = vunpack.c.l.s4 1966171168
    %v390 = vunpack.c.0.s8 %v389
    %v391 = vlaneseq
    %v392 = vshrl.u32 %v391, 7
    %v393 = vsub.s32 %v390, %v392
    %v394 = vrot.slane %v378, %v393
    %v396 = vunpack.c.l.s4 1966171168
    %v397 = vunpack.c.0.s8 %v396
    %v398 = vlaneseq
    %v399 = vshrl.u32 %v398, 7
    %v400 = vsub.s32 %v397, %v399
    %v401 = vrot.slane %v385, %v400
    %v403 = vunpack.c.l.s4 1966171168
    %v404 = vunpack.c.0.s8 %v403
    %v405 = vlaneseq
    %v406 = vshrl.u32 %v405, 7
    %v407 = vsub.s32 %v404, %v406
    %v408 = vrot.slane %v386, %v407
    %v410 = vunpack.c.l.s4 1966171168
    %v411 = vunpack.c.0.s8 %v410
    %v412 = vlaneseq
    %v413 = vshrl.u32 %v412, 7
    %v414 = vsub.s32 %v411, %v413
    %v415 = vrot.slane %v387, %v414
    %v416 = vcombine.high %v394, %v394
    %v417 = vcombine.high %v401, %v401
    %v418 = vcombine.high %v408, %v408
    %v419 = vcombine.high %v415, %v415
    %v420 = vlaneseq
    %v421 = vshrl.u32 %v420, 7
    %v422 = vsub.s32 0, %v421
    %v423 = vrot.slane %v394, %v422
    %v424 = vlaneseq
    %v425 = vshrl.u32 %v424, 7
    %v426 = vsub.s32 0, %v425
    %v427 = vrot.slane %v408, %v426
    %v428 = vlaneseq
    %v429 = vshrl.u32 %v428, 7
    %v430 = vsub.s32 0, %v429
    %v431 = vrot.slane %v416, %v430
    %v432 = vlaneseq
    %v433 = vshrl.u32 %v432, 7
    %v434 = vsub.s32 0, %v433
    %v435 = vrot.slane %v418, %v434
    %v436 = vlaneseq
    %v437 = vshrl.u32 %v436, 7
    %v438 = vsub.s32 0, %v437
    %v439 = vrot.slane %v401, %v438
    %v440 = vlaneseq
    %v441 = vshrl.u32 %v440, 7
    %v442 = vsub.s32 0, %v441
    %v443 = vrot.slane %v415, %v442
    %v444 = vlaneseq
    %v445 = vshrl.u32 %v444, 7
    %v446 = vsub.s32 0, %v445
    %v447 = vrot.slane %v417, %v446
    %v448 = vlaneseq
    %v449 = vshrl.u32 %v448, 7
    %v450 = vsub.s32 0, %v449
    %v451 = vrot.slane %v419, %v450
    %v460 = vsel %vm369, %v423, %v361
    %v461 = vsel %vm369, %v427, %v362
    %v462 = vsel %vm369, %v431, %v363
    %v463 = vsel %vm369, %v435, %v364
    %v464 = vsel %vm369, %v439, %v365
    %v465 = vsel %vm369, %v443, %v366
    %v466 = vsel %vm369, %v447, %v367
    %v467 = vsel %vm369, %v451, %v368
    %vm468 = vcmp.eq.s32.totalorder %v269, 2
    %v470 = vcombine.high %v177, %v177
    %v472 = vunpack.c.l.s4 1966171168
    %v473 = vunpack.c.0.s8 %v472
    %v474 = vlaneseq
    %v475 = vshrl.u32 %v474, 7
    %v476 = vsub.s32 %v473, %v475
    %v477 = vrot.slane %v177, %v476
    %v479 = vunpack.c.l.s4 1966171168
    %v480 = vunpack.c.0.s8 %v479
    %v481 = vlaneseq
    %v482 = vshrl.u32 %v481, 7
    %v483 = vsub.s32 %v480, %v482
    %v484 = vrot.slane %v470, %v483
    %v485 = vcombine.high %v477, %v477
    %v486 = vcombine.high %v484, %v484
    %v488 = vunpack.c.l.s4 1966171168
    %v489 = vunpack.c.0.s8 %v488
    %v490 = vlaneseq
    %v491 = vshrl.u32 %v490, 7
    %v492 = vsub.s32 %v489, %v491
    %v493 = vrot.slane %v477, %v492
    %v495 = vunpack.c.l.s4 1966171168
    %v496 = vunpack.c.0.s8 %v495
    %v497 = vlaneseq
    %v498 = vshrl.u32 %v497, 7
    %v499 = vsub.s32 %v496, %v498
    %v500 = vrot.slane %v484, %v499
    %v502 = vunpack.c.l.s4 1966171168
    %v503 = vunpack.c.0.s8 %v502
    %v504 = vlaneseq
    %v505 = vshrl.u32 %v504, 7
    %v506 = vsub.s32 %v503, %v505
    %v507 = vrot.slane %v485, %v506
    %v509 = vunpack.c.l.s4 1966171168
    %v510 = vunpack.c.0.s8 %v509
    %v511 = vlaneseq
    %v512 = vshrl.u32 %v511, 7
    %v513 = vsub.s32 %v510, %v512
    %v514 = vrot.slane %v486, %v513
    %v515 = vcombine.high %v493, %v493
    %v516 = vcombine.high %v500, %v500
    %v517 = vcombine.high %v507, %v507
    %v518 = vcombine.high %v514, %v514
    %v519 = vlaneseq
    %v520 = vshrl.u32 %v519, 7
    %v521 = vsub.s32 0, %v520
    %v522 = vrot.slane %v493, %v521
    %v523 = vlaneseq
    %v524 = vshrl.u32 %v523, 7
    %v525 = vsub.s32 0, %v524
    %v526 = vrot.slane %v507, %v525
    %v527 = vlaneseq
    %v528 = vshrl.u32 %v527, 7
    %v529 = vsub.s32 0, %v528
    %v530 = vrot.slane %v515, %v529
    %v531 = vlaneseq
    %v532 = vshrl.u32 %v531, 7
    %v533 = vsub.s32 0, %v532
    %v534 = vrot.slane %v517, %v533
    %v535 = vlaneseq
    %v536 = vshrl.u32 %v535, 7
    %v537 = vsub.s32 0, %v536
    %v538 = vrot.slane %v500, %v537
    %v539 = vlaneseq
    %v540 = vshrl.u32 %v539, 7
    %v541 = vsub.s32 0, %v540
    %v542 = vrot.slane %v514, %v541
    %v543 = vlaneseq
    %v544 = vshrl.u32 %v543, 7
    %v545 = vsub.s32 0, %v544
    %v546 = vrot.slane %v516, %v545
    %v547 = vlaneseq
    %v548 = vshrl.u32 %v547, 7
    %v549 = vsub.s32 0, %v548
    %v550 = vrot.slane %v518, %v549
    %v559 = vsel %vm468, %v522, %v460
    %v560 = vsel %vm468, %v526, %v461
    %v561 = vsel %vm468, %v530, %v462
    %v562 = vsel %vm468, %v534, %v463
    %v563 = vsel %vm468, %v538, %v464
    %v564 = vsel %vm468, %v542, %v465
    %v565 = vsel %vm468, %v546, %v466
    %v566 = vsel %vm468, %v550, %v467
    %vm567 = vcmp.eq.s32.totalorder %v269, 3
    %v569 = vcombine.high %v195, %v195
    %v571 = vunpack.c.l.s4 1966171168
    %v572 = vunpack.c.0.s8 %v571
    %v573 = vlaneseq
    %v574 = vshrl.u32 %v573, 7
    %v575 = vsub.s32 %v572, %v574
    %v576 = vrot.slane %v195, %v575
    %v578 = vunpack.c.l.s4 1966171168
    %v579 = vunpack.c.0.s8 %v578
    %v580 = vlaneseq
    %v581 = vshrl.u32 %v580, 7
    %v582 = vsub.s32 %v579, %v581
    %v583 = vrot.slane %v569, %v582
    %v584 = vcombine.high %v576, %v576
    %v585 = vcombine.high %v583, %v583
    %v587 = vunpack.c.l.s4 1966171168
    %v588 = vunpack.c.0.s8 %v587
    %v589 = vlaneseq
    %v590 = vshrl.u32 %v589, 7
    %v591 = vsub.s32 %v588, %v590
    %v592 = vrot.slane %v576, %v591
    %v594 = vunpack.c.l.s4 1966171168
    %v595 = vunpack.c.0.s8 %v594
    %v596 = vlaneseq
    %v597 = vshrl.u32 %v596, 7
    %v598 = vsub.s32 %v595, %v597
    %v599 = vrot.slane %v583, %v598
    %v601 = vunpack.c.l.s4 1966171168
    %v602 = vunpack.c.0.s8 %v601
    %v603 = vlaneseq
    %v604 = vshrl.u32 %v603, 7
    %v605 = vsub.s32 %v602, %v604
    %v606 = vrot.slane %v584, %v605
    %v608 = vunpack.c.l.s4 1966171168
    %v609 = vunpack.c.0.s8 %v608
    %v610 = vlaneseq
    %v611 = vshrl.u32 %v610, 7
    %v612 = vsub.s32 %v609, %v611
    %v613 = vrot.slane %v585, %v612
    %v614 = vcombine.high %v592, %v592
    %v615 = vcombine.high %v599, %v599
    %v616 = vcombine.high %v606, %v606
    %v617 = vcombine.high %v613, %v613
    %v618 = vlaneseq
    %v619 = vshrl.u32 %v618, 7
    %v620 = vsub.s32 0, %v619
    %v621 = vrot.slane %v592, %v620
    %v622 = vlaneseq
    %v623 = vshrl.u32 %v622, 7
    %v624 = vsub.s32 0, %v623
    %v625 = vrot.slane %v606, %v624
    %v626 = vlaneseq
    %v627 = vshrl.u32 %v626, 7
    %v628 = vsub.s32 0, %v627
    %v629 = vrot.slane %v614, %v628
    %v630 = vlaneseq
    %v631 = vshrl.u32 %v630, 7
    %v632 = vsub.s32 0, %v631
    %v633 = vrot.slane %v616, %v632
    %v634 = vlaneseq
    %v635 = vshrl.u32 %v634, 7
    %v636 = vsub.s32 0, %v635
    %v637 = vrot.slane %v599, %v636
    %v638 = vlaneseq
    %v639 = vshrl.u32 %v638, 7
    %v640 = vsub.s32 0, %v639
    %v641 = vrot.slane %v613, %v640
    %v642 = vlaneseq
    %v643 = vshrl.u32 %v642, 7
    %v644 = vsub.s32 0, %v643
    %v645 = vrot.slane %v615, %v644
    %v646 = vlaneseq
    %v647 = vshrl.u32 %v646, 7
    %v648 = vsub.s32 0, %v647
    %v649 = vrot.slane %v617, %v648
    %v658 = vsel %vm567, %v621, %v559
    %v659 = vsel %vm567, %v625, %v560
    %v660 = vsel %vm567, %v629, %v561
    %v661 = vsel %vm567, %v633, %v562
    %v662 = vsel %vm567, %v637, %v563
    %v663 = vsel %vm567, %v641, %v564
    %v664 = vsel %vm567, %v645, %v565
    %v665 = vsel %vm567, %v649, %v566
    %vm666 = vcmp.eq.s32.totalorder %v269, 4
    %v668 = vcombine.high %v213, %v213
    %v670 = vunpack.c.l.s4 1966171168
    %v671 = vunpack.c.0.s8 %v670
    %v672 = vlaneseq
    %v673 = vshrl.u32 %v672, 7
    %v674 = vsub.s32 %v671, %v673
    %v675 = vrot.slane %v213, %v674
    %v677 = vunpack.c.l.s4 1966171168
    %v678 = vunpack.c.0.s8 %v677
    %v679 = vlaneseq
    %v680 = vshrl.u32 %v679, 7
    %v681 = vsub.s32 %v678, %v680
    %v682 = vrot.slane %v668, %v681
    %v683 = vcombine.high %v675, %v675
    %v684 = vcombine.high %v682, %v682
    %v686 = vunpack.c.l.s4 1966171168
    %v687 = vunpack.c.0.s8 %v686
    %v688 = vlaneseq
    %v689 = vshrl.u32 %v688, 7
    %v690 = vsub.s32 %v687, %v689
    %v691 = vrot.slane %v675, %v690
    %v693 = vunpack.c.l.s4 1966171168
    %v694 = vunpack.c.0.s8 %v693
    %v695 = vlaneseq
    %v696 = vshrl.u32 %v695, 7
    %v697 = vsub.s32 %v694, %v696
    %v698 = vrot.slane %v682, %v697
    %v700 = vunpack.c.l.s4 1966171168
    %v701 = vunpack.c.0.s8 %v700
    %v702 = vlaneseq
    %v703 = vshrl.u32 %v702, 7
    %v704 = vsub.s32 %v701, %v703
    %v705 = vrot.slane %v683, %v704
    %v707 = vunpack.c.l.s4 1966171168
    %v708 = vunpack.c.0.s8 %v707
    %v709 = vlaneseq
    %v710 = vshrl.u32 %v709, 7
    %v711 = vsub.s32 %v708, %v710
    %v712 = vrot.slane %v684, %v711
    %v713 = vcombine.high %v691, %v691
    %v714 = vcombine.high %v698, %v698
    %v715 = vcombine.high %v705, %v705
    %v716 = vcombine.high %v712, %v712
    %v717 = vlaneseq
    %v718 = vshrl.u32 %v717, 7
    %v719 = vsub.s32 0, %v718
    %v720 = vrot.slane %v691, %v719
    %v721 = vlaneseq
    %v722 = vshrl.u32 %v721, 7
    %v723 = vsub.s32 0, %v722
    %v724 = vrot.slane %v705, %v723
    %v725 = vlaneseq
    %v726 = vshrl.u32 %v725, 7
    %v727 = vsub.s32 0, %v726
    %v728 = vrot.slane %v713, %v727
    %v729 = vlaneseq
    %v730 = vshrl.u32 %v729, 7
    %v731 = vsub.s32 0, %v730
    %v732 = vrot.slane %v715, %v731
    %v733 = vlaneseq
    %v734 = vshrl.u32 %v733, 7
    %v735 = vsub.s32 0, %v734
    %v736 = vrot.slane %v698, %v735
    %v737 = vlaneseq
    %v738 = vshrl.u32 %v737, 7
    %v739 = vsub.s32 0, %v738
    %v740 = vrot.slane %v712, %v739
    %v741 = vlaneseq
    %v742 = vshrl.u32 %v741, 7
    %v743 = vsub.s32 0, %v742
    %v744 = vrot.slane %v714, %v743
    %v745 = vlaneseq
    %v746 = vshrl.u32 %v745, 7
    %v747 = vsub.s32 0, %v746
    %v748 = vrot.slane %v716, %v747
    %v757 = vsel %vm666, %v720, %v658
    %v758 = vsel %vm666, %v724, %v659
    %v759 = vsel %vm666, %v728, %v660
    %v760 = vsel %vm666, %v732, %v661
    %v761 = vsel %vm666, %v736, %v662
    %v762 = vsel %vm666, %v740, %v663
    %v763 = vsel %vm666, %v744, %v664
    %v764 = vsel %vm666, %v748, %v665
    %vm765 = vcmp.eq.s32.totalorder %v269, 5
    %v767 = vcombine.high %v231, %v231
    %v769 = vunpack.c.l.s4 1966171168
    %v770 = vunpack.c.0.s8 %v769
    %v771 = vlaneseq
    %v772 = vshrl.u32 %v771, 7
    %v773 = vsub.s32 %v770, %v772
    %v774 = vrot.slane %v231, %v773
    %v776 = vunpack.c.l.s4 1966171168
    %v777 = vunpack.c.0.s8 %v776
    %v778 = vlaneseq
    %v779 = vshrl.u32 %v778, 7
    %v780 = vsub.s32 %v777, %v779
    %v781 = vrot.slane %v767, %v780
    %v782 = vcombine.high %v774, %v774
    %v783 = vcombine.high %v781, %v781
    %v785 = vunpack.c.l.s4 1966171168
    %v786 = vunpack.c.0.s8 %v785
    %v787 = vlaneseq
    %v788 = vshrl.u32 %v787, 7
    %v789 = vsub.s32 %v786, %v788
    %v790 = vrot.slane %v774, %v789
    %v792 = vunpack.c.l.s4 1966171168
    %v793 = vunpack.c.0.s8 %v792
    %v794 = vlaneseq
    %v795 = vshrl.u32 %v794, 7
    %v796 = vsub.s32 %v793, %v795
    %v797 = vrot.slane %v781, %v796
    %v799 = vunpack.c.l.s4 1966171168
    %v800 = vunpack.c.0.s8 %v799
    %v801 = vlaneseq
    %v802 = vshrl.u32 %v801, 7
    %v803 = vsub.s32 %v800, %v802
    %v804 = vrot.slane %v782, %v803
    %v806 = vunpack.c.l.s4 1966171168
    %v807 = vunpack.c.0.s8 %v806
    %v808 = vlaneseq
    %v809 = vshrl.u32 %v808, 7
    %v810 = vsub.s32 %v807, %v809
    %v811 = vrot.slane %v783, %v810
    %v812 = vcombine.high %v790, %v790
    %v813 = vcombine.high %v797, %v797
    %v814 = vcombine.high %v804, %v804
    %v815 = vcombine.high %v811, %v811
    %v816 = vlaneseq
    %v817 = vshrl.u32 %v816, 7
    %v818 = vsub.s32 0, %v817
    %v819 = vrot.slane %v790, %v818
    %v820 = vlaneseq
    %v821 = vshrl.u32 %v820, 7
    %v822 = vsub.s32 0, %v821
    %v823 = vrot.slane %v804, %v822
    %v824 = vlaneseq
    %v825 = vshrl.u32 %v824, 7
    %v826 = vsub.s32 0, %v825
    %v827 = vrot.slane %v812, %v826
    %v828 = vlaneseq
    %v829 = vshrl.u32 %v828, 7
    %v830 = vsub.s32 0, %v829
    %v831 = vrot.slane %v814, %v830
    %v832 = vlaneseq
    %v833 = vshrl.u32 %v832, 7
    %v834 = vsub.s32 0, %v833
    %v835 = vrot.slane %v797, %v834
    %v836 = vlaneseq
    %v837 = vshrl.u32 %v836, 7
    %v838 = vsub.s32 0, %v837
    %v839 = vrot.slane %v811, %v838
    %v840 = vlaneseq
    %v841 = vshrl.u32 %v840, 7
    %v842 = vsub.s32 0, %v841
    %v843 = vrot.slane %v813, %v842
    %v844 = vlaneseq
    %v845 = vshrl.u32 %v844, 7
    %v846 = vsub.s32 0, %v845
    %v847 = vrot.slane %v815, %v846
    %v856 = vsel %vm765, %v819, %v757
    %v857 = vsel %vm765, %v823, %v758
    %v858 = vsel %vm765, %v827, %v759
    %v859 = vsel %vm765, %v831, %v760
    %v860 = vsel %vm765, %v835, %v761
    %v861 = vsel %vm765, %v839, %v762
    %v862 = vsel %vm765, %v843, %v763
    %v863 = vsel %vm765, %v847, %v764
    %vm864 = vcmp.eq.s32.totalorder %v269, 6
    %v866 = vcombine.high %v249, %v249
    %v868 = vunpack.c.l.s4 1966171168
    %v869 = vunpack.c.0.s8 %v868
    %v870 = vlaneseq
    %v871 = vshrl.u32 %v870, 7
    %v872 = vsub.s32 %v869, %v871
    %v873 = vrot.slane %v249, %v872
    %v875 = vunpack.c.l.s4 1966171168
    %v876 = vunpack.c.0.s8 %v875
    %v877 = vlaneseq
    %v878 = vshrl.u32 %v877, 7
    %v879 = vsub.s32 %v876, %v878
    %v880 = vrot.slane %v866, %v879
    %v881 = vcombine.high %v873, %v873
    %v882 = vcombine.high %v880, %v880
    %v884 = vunpack.c.l.s4 1966171168
    %v885 = vunpack.c.0.s8 %v884
    %v886 = vlaneseq
    %v887 = vshrl.u32 %v886, 7
    %v888 = vsub.s32 %v885, %v887
    %v889 = vrot.slane %v873, %v888
    %v891 = vunpack.c.l.s4 1966171168
    %v892 = vunpack.c.0.s8 %v891
    %v893 = vlaneseq
    %v894 = vshrl.u32 %v893, 7
    %v895 = vsub.s32 %v892, %v894
    %v896 = vrot.slane %v880, %v895
    %v898 = vunpack.c.l.s4 1966171168
    %v899 = vunpack.c.0.s8 %v898
    %v900 = vlaneseq
    %v901 = vshrl.u32 %v900, 7
    %v902 = vsub.s32 %v899, %v901
    %v903 = vrot.slane %v881, %v902
    %v905 = vunpack.c.l.s4 1966171168
    %v906 = vunpack.c.0.s8 %v905
    %v907 = vlaneseq
    %v908 = vshrl.u32 %v907, 7
    %v909 = vsub.s32 %v906, %v908
    %v910 = vrot.slane %v882, %v909
    %v911 = vcombine.high %v889, %v889
    %v912 = vcombine.high %v896, %v896
    %v913 = vcombine.high %v903, %v903
    %v914 = vcombine.high %v910, %v910
    %v915 = vlaneseq
    %v916 = vshrl.u32 %v915, 7
    %v917 = vsub.s32 0, %v916
    %v918 = vrot.slane %v889, %v917
    %v919 = vlaneseq
    %v920 = vshrl.u32 %v919, 7
    %v921 = vsub.s32 0, %v920
    %v922 = vrot.slane %v903, %v921
    %v923 = vlaneseq
    %v924 = vshrl.u32 %v923, 7
    %v925 = vsub.s32 0, %v924
    %v926 = vrot.slane %v911, %v925
    %v927 = vlaneseq
    %v928 = vshrl.u32 %v927, 7
    %v929 = vsub.s32 0, %v928
    %v930 = vrot.slane %v913, %v929
    %v931 = vlaneseq
    %v932 = vshrl.u32 %v931, 7
    %v933 = vsub.s32 0, %v932
    %v934 = vrot.slane %v896, %v933
    %v935 = vlaneseq
    %v936 = vshrl.u32 %v935, 7
    %v937 = vsub.s32 0, %v936
    %v938 = vrot.slane %v910, %v937
    %v939 = vlaneseq
    %v940 = vshrl.u32 %v939, 7
    %v941 = vsub.s32 0, %v940
    %v942 = vrot.slane %v912, %v941
    %v943 = vlaneseq
    %v944 = vshrl.u32 %v943, 7
    %v945 = vsub.s32 0, %v944
    %v946 = vrot.slane %v914, %v945
    %v955 = vsel %vm864, %v918, %v856
    %v956 = vsel %vm864, %v922, %v857
    %v957 = vsel %vm864, %v926, %v858
    %v958 = vsel %vm864, %v930, %v859
    %v959 = vsel %vm864, %v934, %v860
    %v960 = vsel %vm864, %v938, %v861
    %v961 = vsel %vm864, %v942, %v862
    %v962 = vsel %vm864, %v946, %v863
    %vm963 = vcmp.eq.s32.totalorder %v269, 7
    %v965 = vcombine.high %v267, %v267
    %v967 = vunpack.c.l.s4 1966171168
    %v968 = vunpack.c.0.s8 %v967
    %v969 = vlaneseq
    %v970 = vshrl.u32 %v969, 7
    %v971 = vsub.s32 %v968, %v970
    %v972 = vrot.slane %v267, %v971
    %v974 = vunpack.c.l.s4 1966171168
    %v975 = vunpack.c.0.s8 %v974
    %v976 = vlaneseq
    %v977 = vshrl.u32 %v976, 7
    %v978 = vsub.s32 %v975, %v977
    %v979 = vrot.slane %v965, %v978
    %v980 = vcombine.high %v972, %v972
    %v981 = vcombine.high %v979, %v979
    %v983 = vunpack.c.l.s4 1966171168
    %v984 = vunpack.c.0.s8 %v983
    %v985 = vlaneseq
    %v986 = vshrl.u32 %v985, 7
    %v987 = vsub.s32 %v984, %v986
    %v988 = vrot.slane %v972, %v987
    %v990 = vunpack.c.l.s4 1966171168
    %v991 = vunpack.c.0.s8 %v990
    %v992 = vlaneseq
    %v993 = vshrl.u32 %v992, 7
    %v994 = vsub.s32 %v991, %v993
    %v995 = vrot.slane %v979, %v994
    %v997 = vunpack.c.l.s4 1966171168
    %v998 = vunpack.c.0.s8 %v997
    %v999 = vlaneseq
    %v1000 = vshrl.u32 %v999, 7
    %v1001 = vsub.s32 %v998, %v1000
    %v1002 = vrot.slane %v980, %v1001
    %v1004 = vunpack.c.l.s4 1966171168
    %v1005 = vunpack.c.0.s8 %v1004
    %v1006 = vlaneseq
    %v1007 = vshrl.u32 %v1006, 7
    %v1008 = vsub.s32 %v1005, %v1007
    %v1009 = vrot.slane %v981, %v1008
    %v1010 = vcombine.high %v988, %v988
    %v1011 = vcombine.high %v995, %v995
    %v1012 = vcombine.high %v1002, %v1002
    %v1013 = vcombine.high %v1009, %v1009
    %v1014 = vlaneseq
    %v1015 = vshrl.u32 %v1014, 7
    %v1016 = vsub.s32 0, %v1015
    %v1017 = vrot.slane %v988, %v1016
    %v1018 = vlaneseq
    %v1019 = vshrl.u32 %v1018, 7
    %v1020 = vsub.s32 0, %v1019
    %v1021 = vrot.slane %v1002, %v1020
    %v1022 = vlaneseq
    %v1023 = vshrl.u32 %v1022, 7
    %v1024 = vsub.s32 0, %v1023
    %v1025 = vrot.slane %v1010, %v1024
    %v1026 = vlaneseq
    %v1027 = vshrl.u32 %v1026, 7
    %v1028 = vsub.s32 0, %v1027
    %v1029 = vrot.slane %v1012, %v1028
    %v1030 = vlaneseq
    %v1031 = vshrl.u32 %v1030, 7
    %v1032 = vsub.s32 0, %v1031
    %v1033 = vrot.slane %v995, %v1032
    %v1034 = vlaneseq
    %v1035 = vshrl.u32 %v1034, 7
    %v1036 = vsub.s32 0, %v1035
    %v1037 = vrot.slane %v1009, %v1036
    %v1038 = vlaneseq
    %v1039 = vshrl.u32 %v1038, 7
    %v1040 = vsub.s32 0, %v1039
    %v1041 = vrot.slane %v1011, %v1040
    %v1042 = vlaneseq
    %v1043 = vshrl.u32 %v1042, 7
    %v1044 = vsub.s32 0, %v1043
    %v1045 = vrot.slane %v1013, %v1044
    %v1054 = vsel %vm963, %v1017, %v955
    %v1055 = vsel %vm963, %v1021, %v956
    %v1056 = vsel %vm963, %v1025, %v957
    %v1057 = vsel %vm963, %v1029, %v958
    %v1058 = vsel %vm963, %v1033, %v959
    %v1059 = vsel %vm963, %v1037, %v960
    %v1060 = vsel %vm963, %v1041, %v961
    %v1061 = vsel %vm963, %v1045, %v962
    %1062 = vst [vmem:[#allocation16] sm:$0xff] %v1054
    %1063 = vst [vmem:[#allocation16 + $0x8] sm:$0xff] %v1055
    %1064 = vst [vmem:[#allocation16 + $0x10] sm:$0xff] %v1056
    %1065 = vst [vmem:[#allocation16 + $0x18] sm:$0xff] %v1057
    %1066 = vst [vmem:[#allocation16 + $0x20] sm:$0xff] %v1058
    %1067 = vst [vmem:[#allocation16 + $0x28] sm:$0xff] %v1059
    %1068 = vst [vmem:[#allocation16 + $0x30] sm:$0xff] %v1060
    %1069 = vst [vmem:[#allocation16 + $0x38] sm:$0xff] %v1061
    %v1070 = vld [vmem:[%s1] sm:$0xff]
    %v1071 = vsub.f32 %v122, %v1070
    %v1072 = vand.u32 2147483647, %v1071
    %vm1073 = vcmp.lt.f32.partialorder %v1072, 1.0
    %v1074 = vmul.f32 %v1071, 0.5
    %v1075 = vmul.f32 %v1074, %v1071
    %v1076 = vsub.f32 %v1072, 0.5
    %v1077 = vsel %vm1073, %v1075, %v1076
    %1078 = vadd.xlane.f32.xlu0 %v1077
    %v1079 = vpop.xlane.xlu0 %1078
    %v1080 = vrcp.pop 128.0
    %v1081 = vmul.f32 %v1079, %v1080
    %v1082 = vmax.f32 %v141, %v159
    %v1083 = vmax.f32 %v1082, %v177
    %v1084 = vmax.f32 %v1083, %v195
    %v1085 = vmax.f32 %v1084, %v213
    %v1086 = vmax.f32 %v1085, %v231
    %v1087 = vmax.f32 %v1086, %v249
    %v1088 = vmax.f32 %v1087, %v267
    %v1089 = vsub.f32 %v141, %v1088
    %v1090 = vmul.f32 %v1089, 1.442695
    %v1091 = vpow.pop %v1090
    %v1092 = vsub.f32 %v159, %v1088
    %v1093 = vmul.f32 %v1092, 1.442695
    %v1094 = vpow.pop %v1093
    %v1095 = vadd.f32 %v1091, %v1094
    %v1096 = vsub.f32 %v177, %v1088
    %v1097 = vmul.f32 %v1096, 1.442695
    %v1098 = vpow.pop %v1097
    %v1099 = vadd.f32 %v1095, %v1098
    %v1100 = vsub.f32 %v195, %v1088
    %v1101 = vmul.f32 %v1100, 1.442695
    %v1102 = vpow.pop %v1101
    %v1103 = vadd.f32 %v1099, %v1102
    %v1104 = vsub.f32 %v213, %v1088
    %v1105 = vmul.f32 %v1104, 1.442695
    %v1106 = vpow.pop %v1105
    %v1107 = vadd.f32 %v1103, %v1106
    %v1108 = vsub.f32 %v231, %v1088
    %v1109 = vmul.f32 %v1108, 1.442695
    %v1110 = vpow.pop %v1109
    %v1111 = vadd.f32 %v1107, %v1110
    %v1112 = vsub.f32 %v249, %v1088
    %v1113 = vmul.f32 %v1112, 1.442695
    %v1114 = vpow.pop %v1113
    %v1115 = vadd.f32 %v1111, %v1114
    %v1116 = vsub.f32 %v267, %v1088
    %v1117 = vmul.f32 %v1116, 1.442695
    %v1118 = vpow.pop %v1117
    %v1119 = vadd.f32 %v1115, %v1118
    %v1120 = vlog2.pop %v1119
    %v1121 = vmul.f32 %v1120, 0.6931472
    %v1122 = vadd.f32 %v1088, %v1121
    %v1123 = vld [vmem:[%s2] sm:$0xff]
    %vm1124 = vcmp.eq.s32.totalorder %v1123, 0
    %v1125 = vsel %vm1124, 1, 0
    %v1126 = vcvt.s32.f32 %v1125
    %v1127 = vmul.f32 %v1126, %v141
    %v1128 = vadd.f32 %v1127, 0.0
    %1129 = vadd.xlane.f32.xlu0 %v1126
    %v1130 = vpop.xlane.xlu0 %1129
    %v1131 = vrot.slane %v1130, 4
    %v1132 = vadd.f32 %v1130, %v1131
    %v1133 = vrot.slane %v1132, 2
    %v1134 = vadd.f32 %v1132, %v1133
    %v1135 = vrot.slane %v1134, 1
    %v1136 = vadd.f32 %v1134, %v1135
    %s1137 = vtos %v1136
    %vm1138 = vcmp.eq.s32.totalorder %v1123, 1
    %v1139 = vsel %vm1138, 1, 0
    %v1140 = vcvt.s32.f32 %v1139
    %v1141 = vmul.f32 %v1140, %v159
    %v1142 = vadd.f32 %v1128, %v1141
    %1143 = vadd.xlane.f32.xlu0 %v1140
    %v1144 = vpop.xlane.xlu0 %1143
    %v1145 = vrot.slane %v1144, 4
    %v1146 = vadd.f32 %v1144, %v1145
    %v1147 = vrot.slane %v1146, 2
    %v1148 = vadd.f32 %v1146, %v1147
    %v1149 = vrot.slane %v1148, 1
    %v1150 = vadd.f32 %v1148, %v1149
    %s1151 = vtos %v1150
    %vm1152 = vcmp.eq.s32.totalorder %v1123, 2
    %v1153 = vsel %vm1152, 1, 0
    %v1154 = vcvt.s32.f32 %v1153
    %v1155 = vmul.f32 %v1154, %v177
    %v1156 = vadd.f32 %v1142, %v1155
    %1157 = vadd.xlane.f32.xlu0 %v1154
    %v1158 = vpop.xlane.xlu0 %1157
    %v1159 = vrot.slane %v1158, 4
    %v1160 = vadd.f32 %v1158, %v1159
    %v1161 = vrot.slane %v1160, 2
    %v1162 = vadd.f32 %v1160, %v1161
    %v1163 = vrot.slane %v1162, 1
    %v1164 = vadd.f32 %v1162, %v1163
    %s1165 = vtos %v1164
    %vm1166 = vcmp.eq.s32.totalorder %v1123, 3
    %v1167 = vsel %vm1166, 1, 0
    %v1168 = vcvt.s32.f32 %v1167
    %v1169 = vmul.f32 %v1168, %v195
    %v1170 = vadd.f32 %v1156, %v1169
    %1171 = vadd.xlane.f32.xlu0 %v1168
    %v1172 = vpop.xlane.xlu0 %1171
    %v1173 = vrot.slane %v1172, 4
    %v1174 = vadd.f32 %v1172, %v1173
    %v1175 = vrot.slane %v1174, 2
    %v1176 = vadd.f32 %v1174, %v1175
    %v1177 = vrot.slane %v1176, 1
    %v1178 = vadd.f32 %v1176, %v1177
    %s1179 = vtos %v1178
    %vm1180 = vcmp.eq.s32.totalorder %v1123, 4
    %v1181 = vsel %vm1180, 1, 0
    %v1182 = vcvt.s32.f32 %v1181
    %v1183 = vmul.f32 %v1182, %v213
    %v1184 = vadd.f32 %v1170, %v1183
    %1185 = vadd.xlane.f32.xlu0 %v1182
    %v1186 = vpop.xlane.xlu0 %1185
    %v1187 = vrot.slane %v1186, 4
    %v1188 = vadd.f32 %v1186, %v1187
    %v1189 = vrot.slane %v1188, 2
    %v1190 = vadd.f32 %v1188, %v1189
    %v1191 = vrot.slane %v1190, 1
    %v1192 = vadd.f32 %v1190, %v1191
    %s1193 = vtos %v1192
    %vm1194 = vcmp.eq.s32.totalorder %v1123, 5
    %v1195 = vsel %vm1194, 1, 0
    %v1196 = vcvt.s32.f32 %v1195
    %v1197 = vmul.f32 %v1196, %v231
    %v1198 = vadd.f32 %v1184, %v1197
    %1199 = vadd.xlane.f32.xlu0 %v1196
    %v1200 = vpop.xlane.xlu0 %1199
    %v1201 = vrot.slane %v1200, 4
    %v1202 = vadd.f32 %v1200, %v1201
    %v1203 = vrot.slane %v1202, 2
    %v1204 = vadd.f32 %v1202, %v1203
    %v1205 = vrot.slane %v1204, 1
    %v1206 = vadd.f32 %v1204, %v1205
    %s1207 = vtos %v1206
    %vm1208 = vcmp.eq.s32.totalorder %v1123, 6
    %v1209 = vsel %vm1208, 1, 0
    %v1210 = vcvt.s32.f32 %v1209
    %v1211 = vmul.f32 %v1210, %v249
    %v1212 = vadd.f32 %v1198, %v1211
    %1213 = vadd.xlane.f32.xlu0 %v1210
    %v1214 = vpop.xlane.xlu0 %1213
    %v1215 = vrot.slane %v1214, 4
    %v1216 = vadd.f32 %v1214, %v1215
    %v1217 = vrot.slane %v1216, 2
    %v1218 = vadd.f32 %v1216, %v1217
    %v1219 = vrot.slane %v1218, 1
    %v1220 = vadd.f32 %v1218, %v1219
    %s1221 = vtos %v1220
    %vm1222 = vcmp.eq.s32.totalorder %v1123, 7
    %v1223 = vsel %vm1222, 1, 0
    %v1224 = vcvt.s32.f32 %v1223
    %v1225 = vmul.f32 %v1224, %v267
    %v1226 = vadd.f32 %v1212, %v1225
    %1227 = vadd.xlane.f32.xlu0 %v1224
    %v1228 = vpop.xlane.xlu0 %1227
    %v1229 = vrot.slane %v1228, 4
    %v1230 = vadd.f32 %v1228, %v1229
    %v1231 = vrot.slane %v1230, 2
    %v1232 = vadd.f32 %v1230, %v1231
    %v1233 = vrot.slane %v1232, 1
    %v1234 = vadd.f32 %v1232, %v1233
    %s1235 = vtos %v1234
    %v1236 = vsub.f32 %v1122, %v1226
    %p1237 = scmp.gt.f32.partialorder %s1137, 0.0
    %s1238 = smax.f32 %s1137, 1.0
    %v1239 = vstv %s1238
    %v1240 = vrcp.pop %v1239
    %s1241 = vtos %v1240
    %s1242 = scalar_select %p1237, %s1241, 0.0
    %p1243 = scmp.gt.f32.partialorder %s1151, 0.0
    %s1244 = smax.f32 %s1151, 1.0
    %v1245 = vstv %s1244
    %v1246 = vrcp.pop %v1245
    %s1247 = vtos %v1246
    %s1248 = scalar_select %p1243, %s1247, 0.0
    %p1249 = scmp.gt.f32.partialorder %s1165, 0.0
    %s1250 = smax.f32 %s1165, 1.0
    %v1251 = vstv %s1250
    %v1252 = vrcp.pop %v1251
    %s1253 = vtos %v1252
    %s1254 = scalar_select %p1249, %s1253, 0.0
    %p1255 = scmp.gt.f32.partialorder %s1179, 0.0
    %s1256 = smax.f32 %s1179, 1.0
    %v1257 = vstv %s1256
    %v1258 = vrcp.pop %v1257
    %s1259 = vtos %v1258
    %s1260 = scalar_select %p1255, %s1259, 0.0
    %p1261 = scmp.gt.f32.partialorder %s1193, 0.0
    %s1262 = smax.f32 %s1193, 1.0
    %v1263 = vstv %s1262
    %v1264 = vrcp.pop %v1263
    %s1265 = vtos %v1264
    %s1266 = scalar_select %p1261, %s1265, 0.0
    %p1267 = scmp.gt.f32.partialorder %s1207, 0.0
    %s1268 = smax.f32 %s1207, 1.0
    %v1269 = vstv %s1268
    %v1270 = vrcp.pop %v1269
    %s1271 = vtos %v1270
    %s1272 = scalar_select %p1267, %s1271, 0.0
    %p1273 = scmp.gt.f32.partialorder %s1221, 0.0
    %s1274 = smax.f32 %s1221, 1.0
    %v1275 = vstv %s1274
    %v1276 = vrcp.pop %v1275
    %s1277 = vtos %v1276
    %s1278 = scalar_select %p1273, %s1277, 0.0
    %p1279 = scmp.gt.f32.partialorder %s1235, 0.0
    %s1280 = smax.f32 %s1235, 1.0
    %v1281 = vstv %s1280
    %v1282 = vrcp.pop %v1281
    %s1283 = vtos %v1282
    %s1284 = scalar_select %p1279, %s1283, 0.0
    %s1285 = scalar_select %p1237, 1, 0
    %s1286 = scvt.s32.f32 %s1285
    %s1287 = sadd.f32 %s1242, %s1248
    %s1288 = scalar_select %p1243, 1, 0
    %s1289 = scvt.s32.f32 %s1288
    %s1290 = sadd.f32 %s1286, %s1289
    %s1291 = sadd.f32 %s1287, %s1254
    %s1292 = scalar_select %p1249, 1, 0
    %s1293 = scvt.s32.f32 %s1292
    %s1294 = sadd.f32 %s1290, %s1293
    %s1295 = sadd.f32 %s1291, %s1260
    %s1296 = scalar_select %p1255, 1, 0
    %s1297 = scvt.s32.f32 %s1296
    %s1298 = sadd.f32 %s1294, %s1297
    %s1299 = sadd.f32 %s1295, %s1266
    %s1300 = scalar_select %p1261, 1, 0
    %s1301 = scvt.s32.f32 %s1300
    %s1302 = sadd.f32 %s1298, %s1301
    %s1303 = sadd.f32 %s1299, %s1272
    %s1304 = scalar_select %p1267, 1, 0
    %s1305 = scvt.s32.f32 %s1304
    %s1306 = sadd.f32 %s1302, %s1305
    %s1307 = sadd.f32 %s1303, %s1278
    %s1308 = scalar_select %p1273, 1, 0
    %s1309 = scvt.s32.f32 %s1308
    %s1310 = sadd.f32 %s1306, %s1309
    %s1311 = sadd.f32 %s1307, %s1284
    %s1312 = scalar_select %p1279, 1, 0
    %s1313 = scvt.s32.f32 %s1312
    %s1314 = sadd.f32 %s1310, %s1313
    %p1315 = scmp.le.f32.partialorder %s1314, 1.0
    %v1316 = vstv %s1311
    %v1317 = vrcp.pop %v1316
    %s1318 = vtos %v1317
    %s1319 = smul.f32 %s1242, %s1318
    %s1320 = scalar_select %p1315, 1.0, %s1319
    %v1321 = vstv %s1311
    %v1322 = vrcp.pop %v1321
    %s1323 = vtos %v1322
    %s1324 = smul.f32 %s1248, %s1323
    %s1325 = scalar_select %p1315, 1.0, %s1324
    %v1326 = vstv %s1311
    %v1327 = vrcp.pop %v1326
    %s1328 = vtos %v1327
    %s1329 = smul.f32 %s1254, %s1328
    %s1330 = scalar_select %p1315, 1.0, %s1329
    %v1331 = vstv %s1311
    %v1332 = vrcp.pop %v1331
    %s1333 = vtos %v1332
    %s1334 = smul.f32 %s1260, %s1333
    %s1335 = scalar_select %p1315, 1.0, %s1334
    %v1336 = vstv %s1311
    %v1337 = vrcp.pop %v1336
    %s1338 = vtos %v1337
    %s1339 = smul.f32 %s1266, %s1338
    %s1340 = scalar_select %p1315, 1.0, %s1339
    %v1341 = vstv %s1311
    %v1342 = vrcp.pop %v1341
    %s1343 = vtos %v1342
    %s1344 = smul.f32 %s1272, %s1343
    %s1345 = scalar_select %p1315, 1.0, %s1344
    %v1346 = vstv %s1311
    %v1347 = vrcp.pop %v1346
    %s1348 = vtos %v1347
    %s1349 = smul.f32 %s1278, %s1348
    %s1350 = scalar_select %p1315, 1.0, %s1349
    %v1351 = vstv %s1311
    %v1352 = vrcp.pop %v1351
    %s1353 = vtos %v1352
    %s1354 = smul.f32 %s1284, %s1353
    %s1355 = scalar_select %p1315, 1.0, %s1354
    %v1356 = vstv %s1320
    %v1357 = vmul.f32 %v1126, %v1356
    %v1358 = vadd.f32 %v1357, 0.0
    %v1359 = vstv %s1325
    %v1360 = vmul.f32 %v1140, %v1359
    %v1361 = vadd.f32 %v1358, %v1360
    %v1362 = vstv %s1330
    %v1363 = vmul.f32 %v1154, %v1362
    %v1364 = vadd.f32 %v1361, %v1363
    %v1365 = vstv %s1335
    %v1366 = vmul.f32 %v1168, %v1365
    %v1367 = vadd.f32 %v1364, %v1366
    %v1368 = vstv %s1340
    %v1369 = vmul.f32 %v1182, %v1368
    %v1370 = vadd.f32 %v1367, %v1369
    %v1371 = vstv %s1345
    %v1372 = vmul.f32 %v1196, %v1371
    %v1373 = vadd.f32 %v1370, %v1372
    %v1374 = vstv %s1350
    %v1375 = vmul.f32 %v1210, %v1374
    %v1376 = vadd.f32 %v1373, %v1375
    %v1377 = vstv %s1355
    %v1378 = vmul.f32 %v1224, %v1377
    %v1379 = vadd.f32 %v1376, %v1378
    %v1380 = vmul.f32 %v1379, %v1236
    %1381 = vadd.xlane.f32.xlu0 %v1380
    %v1382 = vpop.xlane.xlu0 %1381
    %v1383 = vmul.f32 %v1382, %v1080
    %s1384 = sld [smem:[#allocation12]]
    %s1385 = sld [smem:[#allocation12 + $0x1]]
    %s1386 = ssub.f32 0.0, %s1384
    %v1387 = vstv %s1386
    %v1388 = vmul.f32 %v1387, 1.442695
    %v1389 = vpow.pop %v1388
    %s1390 = vtos %v1389
    %s1391 = ssub.f32 0.0, %s1385
    %v1392 = vstv %s1391
    %v1393 = vmul.f32 %v1392, 1.442695
    %v1394 = vpow.pop %v1393
    %s1395 = vtos %v1394
    %s1396 = smul.f32 %s1390, 0.5
    %v1397 = vstv %s1396
    %v1398 = vmul.f32 %v1397, %v1081
    %s1399 = smul.f32 %s1384, 0.5
    %v1400 = vstv %s1399
    %v1401 = vadd.f32 %v1398, %v1400
    %v1402 = vstv %s1395
    %v1403 = vmul.f32 %v1402, %v1383
    %v1404 = vadd.f32 %v1401, %v1403
    %s1405 = smul.f32 %s1385, 0.5
    %v1406 = vstv %s1405
    %v1407 = vadd.f32 %v1404, %v1406
    %vm1408 = vcmask 7168
    %v1409 = vsel %vm1408, %v1407, 0.0
    %1410 = vadd.xlane.f32.xlu0 %v1409
    %v1411 = vpop.xlane.xlu0 %1410
    %v1412 = vrot.slane %v1411, 4
    %v1413 = vadd.f32 %v1411, %v1412
    %v1414 = vrot.slane %v1413, 2
    %v1415 = vadd.f32 %v1413, %v1414
    %v1416 = vrot.slane %v1415, 1
    %v1417 = vadd.f32 %v1415, %v1416
    %s1418 = vtos %v1417
    %v1419 = vrcp.pop 8.0
    %s1420 = vtos %v1419
    %s1421 = smul.f32 %s1418, %s1420
    %s1422 = scalar_lea.smem [#allocation14], 0
    %1423 = sst [smem:[%s1422]] %s1421
    // Predicated region
    $region54: #{tpu_custom_call.1} parent=1 // pred_check
      _
    $region55: #{tpu_custom_call.1} parent=1 // pred_check_branch
      %1425 = sbr.rel (0) target = $region57
    $region56: #{tpu_custom_call.1} parent=1 // pred_region
      %s1427 = ssub.s32 16, 16
      %1428 = vsyncadd [#allocation6], %s1427
      %1431 = dma.smem_to_hbm [#allocation14], 16, %s8, [#allocation6]
    $region57: #{tpu_custom_call.1} parent=1 // pred_fallthru
      _
    // Predicated region
    $region58: #{tpu_custom_call.1} parent=1 // pred_check
      _
    $region59: #{tpu_custom_call.1} parent=1 // pred_check_branch
      %1433 = sbr.rel (0) target = $region61
    $region60: #{tpu_custom_call.1} parent=1 // pred_region
      %s1435 = ssub.s32 128, 128
      %1436 = vsyncadd [#allocation5], %s1435
      %s1438 = sshll.u32 [#allocation15], 4
      %s1439 = int_to_ptr.vmem [resolvable:$true] %s1438
      %1441 = dma.vmem_to_hbm [thread:$0]  %s1439, 128, %s9, [#allocation5]
    $region61: #{tpu_custom_call.1} parent=1 // pred_fallthru
      _
    // Predicated region
    $region62: #{tpu_custom_call.1} parent=1 // pred_check
      _
    $region63: #{tpu_custom_call.1} parent=1 // pred_check_branch
      %1443 = sbr.rel (0) target = $region65
    $region64: #{tpu_custom_call.1} parent=1 // pred_region
      %s1445 = ssub.s32 1024, 1024
      %1446 = vsyncadd [#allocation17], %s1445
      %s1447 = sshll.u32 [#allocation16], 4
      %s1448 = int_to_ptr.vmem [resolvable:$true] %s1447
      %1453 = dma.vmem_to_hbm [thread:$0]  %s1448, 1024, %s10, [#allocation17], 128, 128, 8
    $region65: #{tpu_custom_call.1} parent=1 // pred_fallthru
      _
    // Predicated region
    $region66: #{tpu_custom_call.1} parent=1 // pred_check
      _
    $region67: #{tpu_custom_call.1} parent=1 // pred_check_branch
      %1455 = sbr.rel (0) target = $region69
    $region68: #{tpu_custom_call.1} parent=1 // pred_region
      %1456 = dma.done [#allocation6], 16
    $region69: #{tpu_custom_call.1} parent=1 // pred_fallthru
      _
    // Predicated region
    $region70: #{tpu_custom_call.1} parent=1 // pred_check
      _
    $region71: #{tpu_custom_call.1} parent=1 // pred_check_branch
      %1458 = sbr.rel (0) target = $region73
    $region72: #{tpu_custom_call.1} parent=1 // pred_region
      %1459 = dma.done [#allocation5], 128
    $region73: #{tpu_custom_call.1} parent=1 // pred_fallthru
      _
    // Predicated region
    $region74: #{tpu_custom_call.1} parent=1 // pred_check
      _
    $region75: #{tpu_custom_call.1} parent=1 // pred_check_branch
      %1461 = sbr.rel (0) target = $region77
    $region76: #{tpu_custom_call.1} parent=1 // pred_region
      %1462 = dma.done [#allocation17], 1024
    $region77: #{tpu_custom_call.1} parent=1 // pred_fallthru
      _
    %1463 = sfence
    %1464 = vsyncpa [#allocation4], 1
    %1465 = vsyncpa [#allocation5], 1
    %1466 = vsyncpa [#allocation17], 1
    %1467 = vsyncpa [#allocation6], 1
    %1468 = vsyncpa [#allocation7], 1
    %1469 = vsyncpa [#allocation10], 1
    %1470 = vsyncpa [#allocation13], 1

</llo_original>
